<compile_context>
chip_gen: v6e
topology: v6e:2x2x1
jax: 0.10.0
libtpu: 0.0.40
codegen_flags: <defaults>
</compile_context>

<pallas_src>
import random

import jax
import jax.numpy as jnp
from jax import lax
from jax.experimental import pallas as pl
from jax.experimental.pallas import tpu as pltpu

TMEM = 3  # max memory frames ever selected by the reference index logic


# ---------------------------------------------------------------------------
# helpers
# ---------------------------------------------------------------------------

def _pick_tile(n):
    # TODO(synk): pad HW to a multiple of 512/1024 (masked remainder tile) for
    # inputs whose spatial size is not a power-of-two multiple of 128.
    for t in (4096, 2048, 1024, 512, 256, 128):
        if n % t == 0:
            return t
    return n


def _pick_kv_chunk(n):
    for t in (2048, 1024, 512, 256, 128):
        if n % t == 0:
            return t
    return n


def avg_pool2(x):
    n, c, h, w = x.shape
    return x.reshape(n, c, h // 2, 2, w // 2, 2).mean(axis=(3, 5))


def upsample2(x):
    # TODO(synk): fuse this nearest-2x upsample into the consuming decoder
    # kernel (2-D spatial blocks + in-kernel repeat) to cut decoder HBM traffic.
    return jnp.repeat(jnp.repeat(x, 2, axis=2), 2, axis=3)


# ---------------------------------------------------------------------------
# Pallas kernels
# ---------------------------------------------------------------------------

def _small_conv_kernel(x_ref, w_ref, b_ref, o_ref):
    """1x1 conv with tiny Cin as unrolled VPU madds. x:(1,Cin,t) w:(Cout,Cin)."""
    x = x_ref[0].astype(jnp.float32)
    w = w_ref[...].astype(jnp.float32)
    acc = b_ref[...] + w[:, 0:1] * x[0:1, :]
    for c in range(1, x.shape[0]):
        acc = acc + w[:, c:c + 1] * x[c:c + 1, :]
    o_ref[0] = jnp.maximum(acc, 0.0).astype(o_ref.dtype)


def _pyr3_bot_kernel(x_ref, w3_ref, b3_ref, wb_ref, bb_ref, r3_ref, f16_ref):
    """Fused level-3 pyramid conv (Cin=3, VPU) + 1x1 bottleneck (MXU)."""
    x = x_ref[0].astype(jnp.float32)
    w3 = w3_ref[...].astype(jnp.float32)
    acc = b3_ref[...] + w3[:, 0:1] * x[0:1, :]
    for c in range(1, x.shape[0]):
        acc = acc + w3[:, c:c + 1] * x[c:c + 1, :]
    r3 = jnp.maximum(acc, 0.0)                                   # (4C, t) f32
    r3_ref[0] = r3.astype(r3_ref.dtype)
    f16 = jnp.dot(wb_ref[...], r3.astype(wb_ref.dtype),
                  preferred_element_type=jnp.float32) + bb_ref[...]
    f16_ref[0] = f16.astype(f16_ref.dtype)


def _ref_value_kernel(xf_ref, xm_ref, wf_ref, wm_ref, b_ref, o_ref):
    """Ref-backbone value conv: shared frame channels + per-object mask.

    The frame contribution (3 VPU madds) is computed once and reused for
    every object in the block.
    """
    xf = xf_ref[0].astype(jnp.float32)      # (3, t)
    xm = xm_ref[0].astype(jnp.float32)      # (no, t)
    wf = wf_ref[...].astype(jnp.float32)    # (Cv, 3)
    wm = wm_ref[...].astype(jnp.float32)    # (Cv, 1)
    base = b_ref[...] + wf[:, 0:1] * xf[0:1, :]
    for c in range(1, 3):
        base = base + wf[:, c:c + 1] * xf[c:c + 1, :]
    for o in range(xm.shape[0]):
        o_ref[0, o] = jnp.maximum(base + wm * xm[o:o + 1, :], 0.0).astype(o_ref.dtype)


def _dec_kernel(x_ref, s_ref, wx_ref, ws_ref, b_ref, o_ref):
    """Fused concat([x, skip]) -> 1x1 conv -> ReLU; skip dot shared over objects."""
    skip = jnp.dot(ws_ref[...], s_ref[0],
                   preferred_element_type=jnp.float32) + b_ref[...]
    for o in range(x_ref.shape[0]):
        acc = jnp.dot(wx_ref[...], x_ref[o],
                      preferred_element_type=jnp.float32) + skip
        o_ref[o] = jnp.maximum(acc, 0.0).astype(o_ref.dtype)


def _head_kernel(nobj_ref, x_ref, s_ref, wx_ref, ws_ref, b_ref,
                 wo_ref, bo_ref, bg_ref, logit_ref, prob_ref):
    """Last decoder level + score conv + bg channel + n_objs mask + softmax."""
    b = pl.program_id(0)
    t = s_ref.shape[-1]
    no = x_ref.shape[0]
    nc = no + 1
    skip = jnp.dot(ws_ref[...], s_ref[0],
                   preferred_element_type=jnp.float32) + b_ref[...]
    ch = lax.broadcasted_iota(jnp.int32, (nc, t), 0)
    logits = jnp.broadcast_to(bg_ref[...], (nc, t))              # bg bias row 0
    for o in range(no):
        h = jnp.maximum(
            jnp.dot(wx_ref[...], x_ref[o],
                    preferred_element_type=jnp.float32) + skip, 0.0)
        sc = jnp.dot(wo_ref[...], h.astype(wo_ref.dtype),
                     preferred_element_type=jnp.float32) + bo_ref[...]   # (1, t)
        logits = jnp.where(ch == (o + 1), sc, logits)
    logits = jnp.where(ch >= nobj_ref[b], jnp.float32(-1e10), logits)
    m = jnp.max(logits, axis=0, keepdims=True)
    e = jnp.exp(logits - m)
    logit_ref[0] = logits
    prob_ref[0] = e / jnp.sum(e, axis=0, keepdims=True)


def _attn_kernel(pref_ref, q_ref, k_ref, v_ref, wp_ref, bp_ref, o_ref,
                 m_sc, l_sc, acc_sc):
    """Online-softmax attention over the flattened memory-bank axis.

    Scores/softmax are object independent and computed once; the per-object
    values are stacked along channels so one V.p dot covers all objects.
    pref_ref = [valid_kv_len, chunk_map...] (SMEM scalar prefetch).
    """
    kc = pl.program_id(2)
    kvc = k_ref.shape[-1]

    @pl.when(kc == 0)
    def _():
        m_sc[...] = jnp.full(m_sc.shape, -jnp.inf, jnp.float32)
        l_sc[...] = jnp.zeros(l_sc.shape, jnp.float32)
        acc_sc[...] = jnp.zeros(acc_sc.shape, jnp.float32)

    @pl.when(kc * kvc < pref_ref[0])
    def _():
        q = q_ref[0]                           # (C, tq)      bf16
        k = k_ref[0]                           # (C, kvc)     bf16
        v = v_ref[0]                           # (NO*Cv, kvc) bf16
        scale = float(q.shape[0]) ** -0.5
        # transposed scores (kvc, tq): query positions stay on the lane axis
        st = lax.dot_general(k, q, (((0,), (0,)), ((), ())),
                             preferred_element_type=jnp.float32) * scale
        pos = kc * kvc + lax.broadcasted_iota(jnp.int32, st.shape, 0)
        st = jnp.where(pos < pref_ref[0], st, jnp.float32(-1e30))
        m_prev = m_sc[...]
        m_new = jnp.maximum(m_prev, jnp.max(st, axis=0, keepdims=True))
        alpha = jnp.exp(m_prev - m_new)
        p = jnp.exp(st - m_new)
        l_sc[...] = alpha * l_sc[...] + jnp.sum(p, axis=0, keepdims=True)
        acc_sc[...] = alpha * acc_sc[...] + jnp.dot(
            v, p.astype(v.dtype), preferred_element_type=jnp.float32)
        m_sc[...] = m_new

    @pl.when(kc == pl.num_programs(2) - 1)
    def _():
        inv_l = pl.reciprocal(l_sc[...], approx=True)            # (1, tq)
        attn = acc_sc[...] * inv_l                               # (NO*Cv, tq)
        q32 = q_ref[0].astype(jnp.float32)
        cv = wp_ref.shape[1]
        for o in range(o_ref.shape[1]):
            a_o = attn[o * cv:(o + 1) * cv, :]
            out = jnp.dot(wp_ref[...], a_o.astype(wp_ref.dtype),
                          preferred_element_type=jnp.float32) + bp_ref[...] + q32
            o_ref[0, o] = out.astype(o_ref.dtype)


# ---------------------------------------------------------------------------
# Pallas wrappers (grids / BlockSpecs)
# ---------------------------------------------------------------------------

def small_conv(x, w, b):
    """x: (N, Cin, h, w) bf16, tiny Cin -> (N, Cout, h, w) bf16 (ReLU fused)."""
    N, Cin, hh, ww = x.shape
    HW = hh * ww
    Cout = w.shape[0]
    tile = _pick_tile(HW)
    out = pl.pallas_call(
        _small_conv_kernel,
        out_shape=jax.ShapeDtypeStruct((N, Cout, HW), jnp.bfloat16),
        grid=(N, HW // tile),
        in_specs=[pl.BlockSpec((1, Cin, tile), lambda i, m: (i, 0, m)),
                  pl.BlockSpec((Cout, Cin), lambda i, m: (0, 0)),
                  pl.BlockSpec((Cout, 1), lambda i, m: (0, 0))],
        out_specs=pl.BlockSpec((1, Cout, tile), lambda i, m: (i, 0, m)),
        compiler_params=pltpu.CompilerParams(
            dimension_semantics=("parallel", "parallel")),
    )(x.reshape(N, Cin, HW), w, b)
    return out.reshape(N, Cout, hh, ww)


def pyramid3_bottleneck(x, w3, b3, wb, bb):
    """Fused level-3 pyramid conv + bottleneck; returns (r3, f16)."""
    N, Cin, hh, ww = x.shape
    HW = hh * ww
    C3 = w3.shape[0]
    Cb = wb.shape[0]
    tile = _pick_tile(HW)
    r3, f16 = pl.pallas_call(
        _pyr3_bot_kernel,
        out_shape=(jax.ShapeDtypeStruct((N, C3, HW), jnp.bfloat16),
                   jax.ShapeDtypeStruct((N, Cb, HW), jnp.bfloat16)),
        grid=(N, HW // tile),
        in_specs=[pl.BlockSpec((1, Cin, tile), lambda i, m: (i, 0, m)),
                  pl.BlockSpec((C3, Cin), lambda i, m: (0, 0)),
                  pl.BlockSpec((C3, 1), lambda i, m: (0, 0)),
                  pl.BlockSpec((Cb, C3), lambda i, m: (0, 0)),
                  pl.BlockSpec((Cb, 1), lambda i, m: (0, 0))],
        out_specs=[pl.BlockSpec((1, C3, tile), lambda i, m: (i, 0, m)),
                   pl.BlockSpec((1, Cb, tile), lambda i, m: (i, 0, m))],
        compiler_params=pltpu.CompilerParams(
            dimension_semantics=("parallel", "parallel")),
    )(x.reshape(N, Cin, HW), w3, b3, wb, bb)
    return r3.reshape(N, C3, hh, ww), f16.reshape(N, Cb, hh, ww)


def ref_value_conv(frame_p, mask_p, wf, wm, b):
    """frame_p: (N,3,h,w); mask_p: (N,no,h,w) -> (N,no,Cv,h,w)."""
    N, _, hh, ww = frame_p.shape
    no = mask_p.shape[1]
    HW = hh * ww
    Cv = wf.shape[0]
    tile = _pick_tile(HW)
    out = pl.pallas_call(
        _ref_value_kernel,
        out_shape=jax.ShapeDtypeStruct((N, no, Cv, HW), jnp.bfloat16),
        grid=(N, HW // tile),
        in_specs=[
            pl.BlockSpec((1, 3, tile), lambda i, m: (i, 0, m)),
            pl.BlockSpec((1, no, tile), lambda i, m: (i, 0, m)),
            pl.BlockSpec((Cv, 3), lambda i, m: (0, 0)),
            pl.BlockSpec((Cv, 1), lambda i, m: (0, 0)),
            pl.BlockSpec((Cv, 1), lambda i, m: (0, 0)),
        ],
        out_specs=pl.BlockSpec((1, no, Cv, tile), lambda i, m: (i, 0, 0, m)),
        compiler_params=pltpu.CompilerParams(
            dimension_semantics=("parallel", "parallel")),
    )(frame_p.reshape(N, 3, HW), mask_p.reshape(N, no, HW), wf, wm, b)
    return out.reshape(N, no, Cv, hh, ww)


def decoder_block(x, skip, wx, ws, b, *, no):
    """x: (B*no, Cx, h, w), skip: (B, Cs, h, w) -> (B*no, Cout, h, w)."""
    BN, Cx, hh, ww = x.shape
    B = BN // no
    Cs = skip.shape[1]
    Cout = wx.shape[0]
    HW = hh * ww
    tile = _pick_tile(HW)
    out = pl.pallas_call(
        _dec_kernel,
        out_shape=jax.ShapeDtypeStruct((BN, Cout, HW), jnp.bfloat16),
        grid=(B, HW // tile),
        in_specs=[
            pl.BlockSpec((no, Cx, tile), lambda i, m: (i, 0, m)),
            pl.BlockSpec((1, Cs, tile), lambda i, m: (i, 0, m)),
            pl.BlockSpec((Cout, Cx), lambda i, m: (0, 0)),
            pl.BlockSpec((Cout, Cs), lambda i, m: (0, 0)),
            pl.BlockSpec((Cout, 1), lambda i, m: (0, 0)),
        ],
        out_specs=pl.BlockSpec((no, Cout, tile), lambda i, m: (i, 0, m)),
        compiler_params=pltpu.CompilerParams(
            dimension_semantics=("parallel", "parallel")),
    )(x.reshape(BN, Cx, HW), skip.reshape(B, Cs, HW), wx, ws, b)
    return out.reshape(BN, Cout, hh, ww)


def segment_head(x, skip, wx, ws, b, wo, bo, bg, n_objs, *, no):
    """Last decoder level + score conv + bg + mask + softmax, fused per batch."""
    BN, Cx, hh, ww = x.shape
    B = BN // no
    Cs = skip.shape[1]
    C = wx.shape[0]
    NC = no + 1
    HW = hh * ww
    tile = _pick_tile(HW)
    logits, probs = pl.pallas_call(
        _head_kernel,
        out_shape=(jax.ShapeDtypeStruct((B, NC, HW), jnp.float32),
                   jax.ShapeDtypeStruct((B, NC, HW), jnp.float32)),
        grid_spec=pltpu.PrefetchScalarGridSpec(
            num_scalar_prefetch=1,
            grid=(B, HW // tile),
            in_specs=[
                pl.BlockSpec((no, Cx, tile), lambda i, m, nobj: (i, 0, m)),
                pl.BlockSpec((1, Cs, tile), lambda i, m, nobj: (i, 0, m)),
                pl.BlockSpec((C, Cx), lambda i, m, nobj: (0, 0)),
                pl.BlockSpec((C, Cs), lambda i, m, nobj: (0, 0)),
                pl.BlockSpec((C, 1), lambda i, m, nobj: (0, 0)),
                pl.BlockSpec((1, C), lambda i, m, nobj: (0, 0)),
                pl.BlockSpec((1, 1), lambda i, m, nobj: (0, 0)),
                pl.BlockSpec((1, 1), lambda i, m, nobj: (0, 0)),
            ],
            out_specs=[pl.BlockSpec((1, NC, tile), lambda i, m, nobj: (i, 0, m)),
                       pl.BlockSpec((1, NC, tile), lambda i, m, nobj: (i, 0, m))],
        ),
        compiler_params=pltpu.CompilerParams(
            dimension_semantics=("parallel", "parallel")),
    )(n_objs, x.reshape(BN, Cx, HW), skip.reshape(B, Cs, HW),
      wx, ws, b, wo, bo, bg)
    return logits.reshape(B, NC, hh, ww), probs.reshape(B, NC, hh, ww)


def attention_read(q, k_flat, v_flat, w_proj, b_proj, pref):
    """q: (B,C,h,w); k_flat: (B,C,L); v_flat: (B,NO*Cv,L); L = TMEM*HWk.

    Returns (B, NO, C, h, w).  Scores/softmax computed once per (batch, q-tile);
    the flattened KV axis is chunked and reduced with an online softmax.
    """
    B, C, hh, ww = q.shape
    HWq = hh * ww
    NOCv = v_flat.shape[1]
    Cv = w_proj.shape[1]
    NO = NOCv // Cv
    L = k_flat.shape[-1]
    tq = _pick_tile(HWq)
    kvc = _pick_kv_chunk(L)
    n_kc = L // kvc
    out = pl.pallas_call(
        _attn_kernel,
        out_shape=jax.ShapeDtypeStruct((B, NO, C, HWq), jnp.bfloat16),
        grid_spec=pltpu.PrefetchScalarGridSpec(
            num_scalar_prefetch=1,
            grid=(B, HWq // tq, n_kc),
            in_specs=[
                pl.BlockSpec((1, C, tq), lambda b, qi, kc, pr: (b, 0, qi)),
                pl.BlockSpec((1, C, kvc), lambda b, qi, kc, pr: (b, 0, pr[1 + kc])),
                pl.BlockSpec((1, NOCv, kvc),
                             lambda b, qi, kc, pr: (b, 0, pr[1 + kc])),
                pl.BlockSpec((C, Cv), lambda b, qi, kc, pr: (0, 0)),
                pl.BlockSpec((C, 1), lambda b, qi, kc, pr: (0, 0)),
            ],
            out_specs=pl.BlockSpec((1, NO, C, tq),
                                   lambda b, qi, kc, pr: (b, 0, 0, qi)),
            scratch_shapes=[pltpu.VMEM((1, tq), jnp.float32),
                            pltpu.VMEM((1, tq), jnp.float32),
                            pltpu.VMEM((NOCv, tq), jnp.float32)],
        ),
        compiler_params=pltpu.CompilerParams(
            dimension_semantics=("parallel", "parallel", "arbitrary")),
    )(pref, q.reshape(B, C, HWq), k_flat, v_flat, w_proj, b_proj)
    return out.reshape(B, NO, C, hh, ww)


# ---------------------------------------------------------------------------
# Synthetic sub-modules (same tensor plumbing as the injected modules)
# ---------------------------------------------------------------------------

def extract_seg_feats(params, frame_bf):
    """seg_backbone (3-level 1x1 pyramid) + bottleneck. frame_bf: (N,3,H,W) bf16."""
    r1 = small_conv(frame_bf, params['w_r1'], params['b_r1'])
    x2 = avg_pool2(frame_bf)
    r2 = small_conv(x2, params['w_r2'], params['b_r2'])
    x4 = avg_pool2(x2)
    r3, f16 = pyramid3_bottleneck(x4, params['w_r3'], params['b_r3'],
                                  params['w_bot'], params['b_bot'])
    return f16, (r1, r2, r3)


def ref_value(params, frame_bf, obj_mask_bf):
    """ref_backbone: frame + per-object mask -> value features (N,no,Cv,h,w)."""
    fp = avg_pool2(avg_pool2(frame_bf))
    mp = avg_pool2(avg_pool2(obj_mask_bf))
    return ref_value_conv(fp, mp, params['w_ref_rgb'], params['w_ref_m'],
                          params['b_ref'])


def segment(params, opt_feat, fpns, n_objs, *, no):
    """seg_head: FPN decoder with fused concat-convs + fused score/softmax head."""
    r1, r2, r3 = fpns
    x = decoder_block(opt_feat, r3, params['w_d3x'], params['w_d3s'],
                      params['b_d3'], no=no)
    x = upsample2(x)
    x = decoder_block(x, r2, params['w_d2x'], params['w_d2s'],
                      params['b_d2'], no=no)
    x = upsample2(x)
    return segment_head(x, r1, params['w_d1x'], params['w_d1s'], params['b_d1'],
                        params['w_out'], params['b_out'], params['bg_bias'],
                        n_objs, no=no)


@jax.jit
def _jit_extract(params, frames_flat_bf):
    return extract_seg_feats(params, frames_flat_bf)


@jax.jit
def _jit_ref_value(params, frames_flat_bf, masks_flat_bf):
    return ref_value(params, frames_flat_bf, masks_flat_bf)


@jax.jit
def _jit_decode(params, f16, r1, r2, r3, k_flat, v_flat, pref, n_objs):
    enc = attention_read(f16, k_flat, v_flat,
                         params['w_proj'], params['b_proj'], pref)
    B, no = enc.shape[0], enc.shape[1]
    opt_feat = enc.reshape((B * no,) + enc.shape[2:])
    return segment(params, opt_feat, (r1, r2, r3), n_objs, no=no)


# ---------------------------------------------------------------------------
# ECOSNet forward (mirrors the PyTorch control flow; extraction is batched
# over T and the memory bank is fixed-size -> one compile per pallas_call)
# ---------------------------------------------------------------------------

def ecosnet_forward(params, frames, obj_masks, n_objs):
    """frames: (B,T,3,H,W) f32, obj_masks: (B,T,num_objs,H,W) f32, n_objs: (B,) i32."""
    B, T = frames.shape[:2]
    NO = obj_masks.shape[2] - 1
    frames_bf = frames.astype(jnp.bfloat16)
    masks_bf = obj_masks.astype(jnp.bfloat16)

    # --- batched per-frame backbone + bottleneck for all T frames (1 dispatch)
    f16_all, (r1_all, r2_all, r3_all) = _jit_extract(
        params, frames_bf.reshape((B * T,) + frames_bf.shape[2:]))

    def _unbatch(x):
        return x.reshape((B, T) + x.shape[1:])

    f16_all = _unbatch(f16_all)
    r1_all = _unbatch(r1_all)
    r2_all = _unbatch(r2_all)
    r3_all = _unbatch(r3_all)

    # --- batched ref-value features for every frame that can enter the bank
    nvf = max(1, T - 1)
    v_all = _jit_ref_value(
        params,
        frames_bf[:, :nvf].reshape((B * nvf,) + frames_bf.shape[2:]),
        masks_bf[:, :nvf, 1:].reshape((B * nvf, NO) + masks_bf.shape[3:]))
    v_all = v_all.reshape((B, nvf) + v_all.shape[1:])    # (B, nvf, NO, Cv, h4, w4)

    C = f16_all.shape[2]
    Cv = v_all.shape[3]
    h4, w4 = f16_all.shape[-2:]
    HWk = h4 * w4
    k_hist = f16_all.reshape(B, T, C, HWk)               # key_list[i] = frame i
    v_hist = v_all.reshape(B, nvf, NO * Cv, HWk)         # value_list[i] = frame i

    L = TMEM * HWk
    kvc = _pick_kv_chunk(L)
    n_kc = L // kvc

    logits_list, probs_list = [], []
    for t in range(T):
        # memory-slot selection (identical to the PyTorch reference logic)
        if t <= 1:
            sel_idx = [0]
        elif t <= 3:
            sel_idx = list(range(t))
        else:
            idx_list = list(range(1, t - 1))
            random.shuffle(idx_list)
            sel_idx = [0] + idx_list[:1] + [t - 1]
        nv = len(sel_idx)

        # fixed-size flattened memory bank: valid slots packed first, zero pad
        k_parts = [k_hist[:, i] for i in sel_idx]
        v_parts = [v_hist[:, i] for i in sel_idx]
        if nv < TMEM:
            pad = TMEM - nv
            k_parts.append(jnp.zeros((B, C, pad * HWk), jnp.bfloat16))
            v_parts.append(jnp.zeros((B, NO * Cv, pad * HWk), jnp.bfloat16))
        k_flat = jnp.concatenate(k_parts, axis=-1)
        v_flat = jnp.concatenate(v_parts, axis=-1)

        nvc = -(-(nv * HWk) // kvc)                       # number of valid chunks
        pref = jnp.array([nv * HWk] + [min(kc, nvc - 1) for kc in range(n_kc)],
                         jnp.int32)

        logits_m, probs = _jit_decode(params, f16_all[:, t], r1_all[:, t],
                                      r2_all[:, t], r3_all[:, t],
                                      k_flat, v_flat, pref, n_objs)
        logits_list.append(logits_m)
        probs_list.append(probs)

    pred_logits = jnp.stack(logits_list, axis=1)
    pred_probs = jnp.stack(probs_list, axis=1)
    return pred_logits, pred_probs, None


# ---------------------------------------------------------------------------
# Deterministic parameter init (weights bf16, biases f32, accumulation in f32)
# ---------------------------------------------------------------------------

def init_params(key, hidden=32):
    ks = jax.random.split(key, 14)

    def w(k, shape):
        return (0.05 * jax.random.normal(k, shape, jnp.float32)).astype(jnp.bfloat16)

    def zb(c):
        return jnp.zeros((c, 1), jnp.float32)

    C = hidden
    return dict(
        # seg backbone (1x1 conv projections per pyramid level)
        w_r1=w(ks[0], (C, 3)), b_r1=zb(C),
        w_r2=w(ks[1], (2 * C, 3)), b_r2=zb(2 * C),
        w_r3=w(ks[2], (4 * C, 3)), b_r3=zb(4 * C),
        # bottleneck: nn.Conv2d(hidden*4, hidden, kernel_size=1)
        w_bot=w(ks[3], (C, 4 * C)), b_bot=zb(C),
        # ref backbone (split weights: 3 frame channels + 1 mask channel)
        w_ref_rgb=w(ks[4], (C, 3)), w_ref_m=w(ks[5], (C, 1)), b_ref=zb(C),
        # transformer output projection
        w_proj=w(ks[6], (C, C)), b_proj=zb(C),
        # segmentation head decoder (split-K weights for the fused concat-convs)
        w_d3x=w(ks[7], (C, C)), w_d3s=w(ks[8], (C, 4 * C)), b_d3=zb(C),
        w_d2x=w(ks[9], (C, C)), w_d2s=w(ks[10], (C, 2 * C)), b_d2=zb(C),
        w_d1x=w(ks[11], (C, C)), w_d1s=w(ks[12], (C, C)), b_d1=zb(C),
        w_out=w(ks[13], (1, C)), b_out=jnp.zeros((1, 1), jnp.float32),
        bg_bias=jnp.zeros((1, 1), jnp.float32),
    )


if __name__ == "__main__":
    random.seed(0)
    key = jax.random.PRNGKey(0)
    pk, fk, mk = jax.random.split(key, 3)

    hidden_dim = 32
    B, T, H, W = 2, 3, 16, 16
    num_objs = 3  # background + 2 objects

    params = init_params(pk, hidden=hidden_dim)
    frames = jax.random.normal(fk, (B, T, 3, H, W), jnp.float32)
    obj_masks = (jax.random.uniform(mk, (B, T, num_objs, H, W)) > 0.5).astype(jnp.float32)
    n_objs = jnp.array([2, 3], jnp.int32)

    pred_logits, pred_probs, _ = ecosnet_forward(params, frames, obj_masks, n_objs)
    jax.block_until_ready((pred_logits, pred_probs))

    assert pred_logits.shape == (B, T, num_objs, H, W)
    assert pred_probs.shape == (B, T, num_objs, H, W)
    print("KERNEL_OK")
</pallas_src>

<mosaic_0001>
module attributes {stable_mosaic.version = 11 : i64} {
  func.func @_pyr3_bot_kernel(%arg0: i32, %arg1: i32, %arg2: memref<1x3x16xbf16, #tpu.memory_space<vmem>>, %arg3: memref<128x3xbf16, #tpu.memory_space<vmem>>, %arg4: memref<128x1xf32, #tpu.memory_space<vmem>>, %arg5: memref<32x128xbf16, #tpu.memory_space<vmem>>, %arg6: memref<32x1xf32, #tpu.memory_space<vmem>>, %arg7: memref<1x128x16xbf16, #tpu.memory_space<vmem>>, %arg8: memref<1x32x16xbf16, #tpu.memory_space<vmem>>) attributes {dimension_semantics = [#tpu.dimension_semantics<parallel>, #tpu.dimension_semantics<parallel>], iteration_bounds = array<i64: 6, 1>, scalar_prefetch = 0 : i64, scratch_operands = 0 : i64, tpu.core_type = #tpu.core_type<tc>, window_params = [{transform_indices = @transform_0, window_bounds = array<i64: 1, 3, 16>}, {pipeline_mode = #tpu.pipeline_mode<synchronous>, transform_indices = @transform_1, window_bounds = array<i64: 128, 3>}, {pipeline_mode = #tpu.pipeline_mode<synchronous>, transform_indices = @transform_2, window_bounds = array<i64: 128, 1>}, {pipeline_mode = #tpu.pipeline_mode<synchronous>, transform_indices = @transform_3, window_bounds = array<i64: 32, 128>}, {pipeline_mode = #tpu.pipeline_mode<synchronous>, transform_indices = @transform_4, window_bounds = array<i64: 32, 1>}, {transform_indices = @transform_5, window_bounds = array<i64: 1, 128, 16>}, {transform_indices = @transform_6, window_bounds = array<i64: 1, 32, 16>}]} {
    %c0 = arith.constant 0 : index
    %c0_0 = arith.constant 0 : index
    %c0_1 = arith.constant 0 : index
    %0 = vector.load %arg2[%c0, %c0_0, %c0_1] : memref<1x3x16xbf16, #tpu.memory_space<vmem>>, vector<1x3x16xbf16>
    %1 = vector.shape_cast %0 : vector<1x3x16xbf16> to vector<3x16xbf16>
    %2 = arith.extf %1 : vector<3x16xbf16> to vector<3x16xf32>
    %c0_2 = arith.constant 0 : index
    %c0_3 = arith.constant 0 : index
    %3 = vector.load %arg3[%c0_2, %c0_3] : memref<128x3xbf16, #tpu.memory_space<vmem>>, vector<128x3xbf16>
    %4 = arith.extf %3 : vector<128x3xbf16> to vector<128x3xf32>
    %c0_4 = arith.constant 0 : index
    %c0_5 = arith.constant 0 : index
    %5 = vector.load %arg4[%c0_4, %c0_5] : memref<128x1xf32, #tpu.memory_space<vmem>>, vector<128x1xf32>
    %6 = vector.extract_strided_slice %4 {offsets = [0, 0], sizes = [128, 1], strides = [1, 1]} : vector<128x3xf32> to vector<128x1xf32>
    %7 = vector.extract_strided_slice %2 {offsets = [0, 0], sizes = [1, 16], strides = [1, 1]} : vector<3x16xf32> to vector<1x16xf32>
    %8 = vector.broadcast %6 : vector<128x1xf32> to vector<128x16xf32>
    %9 = vector.broadcast %7 : vector<1x16xf32> to vector<128x16xf32>
    %10 = arith.mulf %8, %9 : vector<128x16xf32>
    %11 = vector.broadcast %5 : vector<128x1xf32> to vector<128x16xf32>
    %12 = arith.addf %11, %10 : vector<128x16xf32>
    %13 = vector.extract_strided_slice %4 {offsets = [0, 1], sizes = [128, 1], strides = [1, 1]} : vector<128x3xf32> to vector<128x1xf32>
    %14 = vector.extract_strided_slice %2 {offsets = [1, 0], sizes = [1, 16], strides = [1, 1]} : vector<3x16xf32> to vector<1x16xf32>
    %15 = vector.broadcast %13 : vector<128x1xf32> to vector<128x16xf32>
    %16 = vector.broadcast %14 : vector<1x16xf32> to vector<128x16xf32>
    %17 = arith.mulf %15, %16 : vector<128x16xf32>
    %18 = arith.addf %12, %17 : vector<128x16xf32>
    %19 = vector.extract_strided_slice %4 {offsets = [0, 2], sizes = [128, 1], strides = [1, 1]} : vector<128x3xf32> to vector<128x1xf32>
    %20 = vector.extract_strided_slice %2 {offsets = [2, 0], sizes = [1, 16], strides = [1, 1]} : vector<3x16xf32> to vector<1x16xf32>
    %21 = vector.broadcast %19 : vector<128x1xf32> to vector<128x16xf32>
    %22 = vector.broadcast %20 : vector<1x16xf32> to vector<128x16xf32>
    %23 = arith.mulf %21, %22 : vector<128x16xf32>
    %24 = arith.addf %18, %23 : vector<128x16xf32>
    %cst = arith.constant 0.000000e+00 : f32
    %25 = vector.broadcast %cst : f32 to vector<128x16xf32>
    %26 = arith.maximumf %24, %25 : vector<128x16xf32>
    %27 = arith.truncf %26 : vector<128x16xf32> to vector<128x16xbf16>
    %c0_6 = arith.constant 0 : index
    %c0_7 = arith.constant 0 : index
    %c0_8 = arith.constant 0 : index
    %28 = vector.load %arg7[%c0_6, %c0_7, %c0_8] : memref<1x128x16xbf16, #tpu.memory_space<vmem>>, vector<1x128x16xbf16>
    %29 = vector.shape_cast %28 : vector<1x128x16xbf16> to vector<128x16xbf16>
    %30 = vector.shape_cast %27 : vector<128x16xbf16> to vector<1x128x16xbf16>
    tpu.vector_store %arg7[%c0_6, %c0_7, %c0_8], %30 {strides = array<i32>} : memref<1x128x16xbf16, #tpu.memory_space<vmem>>, vector<1x128x16xbf16>,
    %c0_9 = arith.constant 0 : index
    %c0_10 = arith.constant 0 : index
    %31 = vector.load %arg5[%c0_9, %c0_10] : memref<32x128xbf16, #tpu.memory_space<vmem>>, vector<32x128xbf16>
    %32 = arith.truncf %26 : vector<128x16xf32> to vector<128x16xbf16>
    %cst_11 = arith.constant dense<0.000000e+00> : vector<32x16xf32>
    %33 = tpu.matmul %31, %32, %cst_11 {dimension_numbers = #tpu.dot_dimension_numbers<[1], [0], [0], [1], [0, 0, 1, 1], [], []>} : vector<32x128xbf16>, vector<128x16xbf16>, vector<32x16xf32> -> vector<32x16xf32>
    %c0_12 = arith.constant 0 : index
    %c0_13 = arith.constant 0 : index
    %34 = vector.load %arg6[%c0_12, %c0_13] : memref<32x1xf32, #tpu.memory_space<vmem>>, vector<32x1xf32>
    %35 = vector.broadcast %34 : vector<32x1xf32> to vector<32x16xf32>
    %36 = arith.addf %33, %35 : vector<32x16xf32>
    %37 = arith.truncf %36 : vector<32x16xf32> to vector<32x16xbf16>
    %c0_14 = arith.constant 0 : index
    %c0_15 = arith.constant 0 : index
    %c0_16 = arith.constant 0 : index
    %38 = vector.load %arg8[%c0_14, %c0_15, %c0_16] : memref<1x32x16xbf16, #tpu.memory_space<vmem>>, vector<1x32x16xbf16>
    %39 = vector.shape_cast %38 : vector<1x32x16xbf16> to vector<32x16xbf16>
    %40 = vector.shape_cast %37 : vector<32x16xbf16> to vector<1x32x16xbf16>
    tpu.vector_store %arg8[%c0_14, %c0_15, %c0_16], %40 {strides = array<i32>} : memref<1x32x16xbf16, #tpu.memory_space<vmem>>, vector<1x32x16xbf16>,
    return
  }
  func.func @transform_0(%arg0: i32, %arg1: i32) -> (i32, i32, i32) {
    %c0_i32 = arith.constant 0 : i32
    %c0_i32_0 = arith.constant 0 : i32
    return %arg0, %c0_i32, %arg1 : i32, i32, i32
  }
  func.func @transform_1(%arg0: i32, %arg1: i32) -> (i32, i32) {
    %c0_i32 = arith.constant 0 : i32
    %c0_i32_0 = arith.constant 0 : i32
    %c0_i32_1 = arith.constant 0 : i32
    return %c0_i32, %c0_i32_0 : i32, i32
  }
  func.func @transform_2(%arg0: i32, %arg1: i32) -> (i32, i32) {
    %c0_i32 = arith.constant 0 : i32
    %c0_i32_0 = arith.constant 0 : i32
    %c0_i32_1 = arith.constant 0 : i32
    return %c0_i32, %c0_i32_0 : i32, i32
  }
  func.func @transform_3(%arg0: i32, %arg1: i32) -> (i32, i32) {
    %c0_i32 = arith.constant 0 : i32
    %c0_i32_0 = arith.constant 0 : i32
    %c0_i32_1 = arith.constant 0 : i32
    return %c0_i32, %c0_i32_0 : i32, i32
  }
  func.func @transform_4(%arg0: i32, %arg1: i32) -> (i32, i32) {
    %c0_i32 = arith.constant 0 : i32
    %c0_i32_0 = arith.constant 0 : i32
    %c0_i32_1 = arith.constant 0 : i32
    return %c0_i32, %c0_i32_0 : i32, i32
  }
  func.func @transform_5(%arg0: i32, %arg1: i32) -> (i32, i32, i32) {
    %c0_i32 = arith.constant 0 : i32
    %c0_i32_0 = arith.constant 0 : i32
    return %arg0, %c0_i32, %arg1 : i32, i32, i32
  }
  func.func @transform_6(%arg0: i32, %arg1: i32) -> (i32, i32, i32) {
    %c0_i32 = arith.constant 0 : i32
    %c0_i32_0 = arith.constant 0 : i32
    return %arg0, %c0_i32, %arg1 : i32, i32, i32
  }
}

module attributes {stable_mosaic.version = 11 : i64} {
  func.func @_small_conv_kernel(%arg0: i32, %arg1: i32, %arg2: memref<1x3x64xbf16, #tpu.memory_space<vmem>>, %arg3: memref<64x3xbf16, #tpu.memory_space<vmem>>, %arg4: memref<64x1xf32, #tpu.memory_space<vmem>>, %arg5: memref<1x64x64xbf16, #tpu.memory_space<vmem>>) attributes {dimension_semantics = [#tpu.dimension_semantics<parallel>, #tpu.dimension_semantics<parallel>], iteration_bounds = array<i64: 6, 1>, scalar_prefetch = 0 : i64, scratch_operands = 0 : i64, tpu.core_type = #tpu.core_type<tc>, window_params = [{transform_indices = @transform_0, window_bounds = array<i64: 1, 3, 64>}, {pipeline_mode = #tpu.pipeline_mode<synchronous>, transform_indices = @transform_1, window_bounds = array<i64: 64, 3>}, {pipeline_mode = #tpu.pipeline_mode<synchronous>, transform_indices = @transform_2, window_bounds = array<i64: 64, 1>}, {transform_indices = @transform_3, window_bounds = array<i64: 1, 64, 64>}]} {
    %c0 = arith.constant 0 : index
    %c0_0 = arith.constant 0 : index
    %c0_1 = arith.constant 0 : index
    %0 = vector.load %arg2[%c0, %c0_0, %c0_1] : memref<1x3x64xbf16, #tpu.memory_space<vmem>>, vector<1x3x64xbf16>
    %1 = vector.shape_cast %0 : vector<1x3x64xbf16> to vector<3x64xbf16>
    %2 = arith.extf %1 : vector<3x64xbf16> to vector<3x64xf32>
    %c0_2 = arith.constant 0 : index
    %c0_3 = arith.constant 0 : index
    %3 = vector.load %arg3[%c0_2, %c0_3] : memref<64x3xbf16, #tpu.memory_space<vmem>>, vector<64x3xbf16>
    %4 = arith.extf %3 : vector<64x3xbf16> to vector<64x3xf32>
    %c0_4 = arith.constant 0 : index
    %c0_5 = arith.constant 0 : index
    %5 = vector.load %arg4[%c0_4, %c0_5] : memref<64x1xf32, #tpu.memory_space<vmem>>, vector<64x1xf32>
    %6 = vector.extract_strided_slice %4 {offsets = [0, 0], sizes = [64, 1], strides = [1, 1]} : vector<64x3xf32> to vector<64x1xf32>
    %7 = vector.extract_strided_slice %2 {offsets = [0, 0], sizes = [1, 64], strides = [1, 1]} : vector<3x64xf32> to vector<1x64xf32>
    %8 = vector.broadcast %6 : vector<64x1xf32> to vector<64x64xf32>
    %9 = vector.broadcast %7 : vector<1x64xf32> to vector<64x64xf32>
    %10 = arith.mulf %8, %9 : vector<64x64xf32>
    %11 = vector.broadcast %5 : vector<64x1xf32> to vector<64x64xf32>
    %12 = arith.addf %11, %10 : vector<64x64xf32>
    %13 = vector.extract_strided_slice %4 {offsets = [0, 1], sizes = [64, 1], strides = [1, 1]} : vector<64x3xf32> to vector<64x1xf32>
    %14 = vector.extract_strided_slice %2 {offsets = [1, 0], sizes = [1, 64], strides = [1, 1]} : vector<3x64xf32> to vector<1x64xf32>
    %15 = vector.broadcast %13 : vector<64x1xf32> to vector<64x64xf32>
    %16 = vector.broadcast %14 : vector<1x64xf32> to vector<64x64xf32>
    %17 = arith.mulf %15, %16 : vector<64x64xf32>
    %18 = arith.addf %12, %17 : vector<64x64xf32>
    %19 = vector.extract_strided_slice %4 {offsets = [0, 2], sizes = [64, 1], strides = [1, 1]} : vector<64x3xf32> to vector<64x1xf32>
    %20 = vector.extract_strided_slice %2 {offsets = [2, 0], sizes = [1, 64], strides = [1, 1]} : vector<3x64xf32> to vector<1x64xf32>
    %21 = vector.broadcast %19 : vector<64x1xf32> to vector<64x64xf32>
    %22 = vector.broadcast %20 : vector<1x64xf32> to vector<64x64xf32>
    %23 = arith.mulf %21, %22 : vector<64x64xf32>
    %24 = arith.addf %18, %23 : vector<64x64xf32>
    %cst = arith.constant 0.000000e+00 : f32
    %25 = vector.broadcast %cst : f32 to vector<64x64xf32>
    %26 = arith.maximumf %24, %25 : vector<64x64xf32>
    %27 = arith.truncf %26 : vector<64x64xf32> to vector<64x64xbf16>
    %c0_6 = arith.constant 0 : index
    %c0_7 = arith.constant 0 : index
    %c0_8 = arith.constant 0 : index
    %28 = vector.load %arg5[%c0_6, %c0_7, %c0_8] : memref<1x64x64xbf16, #tpu.memory_space<vmem>>, vector<1x64x64xbf16>
    %29 = vector.shape_cast %28 : vector<1x64x64xbf16> to vector<64x64xbf16>
    %30 = vector.shape_cast %27 : vector<64x64xbf16> to vector<1x64x64xbf16>
    tpu.vector_store %arg5[%c0_6, %c0_7, %c0_8], %30 {strides = array<i32>} : memref<1x64x64xbf16, #tpu.memory_space<vmem>>, vector<1x64x64xbf16>,
    return
  }
  func.func @transform_0(%arg0: i32, %arg1: i32) -> (i32, i32, i32) {
    %c0_i32 = arith.constant 0 : i32
    %c0_i32_0 = arith.constant 0 : i32
    return %arg0, %c0_i32, %arg1 : i32, i32, i32
  }
  func.func @transform_1(%arg0: i32, %arg1: i32) -> (i32, i32) {
    %c0_i32 = arith.constant 0 : i32
    %c0_i32_0 = arith.constant 0 : i32
    %c0_i32_1 = arith.constant 0 : i32
    return %c0_i32, %c0_i32_0 : i32, i32
  }
  func.func @transform_2(%arg0: i32, %arg1: i32) -> (i32, i32) {
    %c0_i32 = arith.constant 0 : i32
    %c0_i32_0 = arith.constant 0 : i32
    %c0_i32_1 = arith.constant 0 : i32
    return %c0_i32, %c0_i32_0 : i32, i32
  }
  func.func @transform_3(%arg0: i32, %arg1: i32) -> (i32, i32, i32) {
    %c0_i32 = arith.constant 0 : i32
    %c0_i32_0 = arith.constant 0 : i32
    return %arg0, %c0_i32, %arg1 : i32, i32, i32
  }
}

module attributes {stable_mosaic.version = 11 : i64} {
  func.func @_small_conv_kernel(%arg0: i32, %arg1: i32, %arg2: memref<1x3x256xbf16, #tpu.memory_space<vmem>>, %arg3: memref<32x3xbf16, #tpu.memory_space<vmem>>, %arg4: memref<32x1xf32, #tpu.memory_space<vmem>>, %arg5: memref<1x32x256xbf16, #tpu.memory_space<vmem>>) attributes {dimension_semantics = [#tpu.dimension_semantics<parallel>, #tpu.dimension_semantics<parallel>], iteration_bounds = array<i64: 6, 1>, scalar_prefetch = 0 : i64, scratch_operands = 0 : i64, tpu.core_type = #tpu.core_type<tc>, window_params = [{transform_indices = @transform_0, window_bounds = array<i64: 1, 3, 256>}, {pipeline_mode = #tpu.pipeline_mode<synchronous>, transform_indices = @transform_1, window_bounds = array<i64: 32, 3>}, {pipeline_mode = #tpu.pipeline_mode<synchronous>, transform_indices = @transform_2, window_bounds = array<i64: 32, 1>}, {transform_indices = @transform_3, window_bounds = array<i64: 1, 32, 256>}]} {
    %c0 = arith.constant 0 : index
    %c0_0 = arith.constant 0 : index
    %c0_1 = arith.constant 0 : index
    %0 = vector.load %arg2[%c0, %c0_0, %c0_1] : memref<1x3x256xbf16, #tpu.memory_space<vmem>>, vector<1x3x256xbf16>
    %1 = vector.shape_cast %0 : vector<1x3x256xbf16> to vector<3x256xbf16>
    %2 = arith.extf %1 : vector<3x256xbf16> to vector<3x256xf32>
    %c0_2 = arith.constant 0 : index
    %c0_3 = arith.constant 0 : index
    %3 = vector.load %arg3[%c0_2, %c0_3] : memref<32x3xbf16, #tpu.memory_space<vmem>>, vector<32x3xbf16>
    %4 = arith.extf %3 : vector<32x3xbf16> to vector<32x3xf32>
    %c0_4 = arith.constant 0 : index
    %c0_5 = arith.constant 0 : index
    %5 = vector.load %arg4[%c0_4, %c0_5] : memref<32x1xf32, #tpu.memory_space<vmem>>, vector<32x1xf32>
    %6 = vector.extract_strided_slice %4 {offsets = [0, 0], sizes = [32, 1], strides = [1, 1]} : vector<32x3xf32> to vector<32x1xf32>
    %7 = vector.extract_strided_slice %2 {offsets = [0, 0], sizes = [1, 256], strides = [1, 1]} : vector<3x256xf32> to vector<1x256xf32>
    %8 = vector.broadcast %6 : vector<32x1xf32> to vector<32x256xf32>
    %9 = vector.broadcast %7 : vector<1x256xf32> to vector<32x256xf32>
    %10 = arith.mulf %8, %9 : vector<32x256xf32>
    %11 = vector.broadcast %5 : vector<32x1xf32> to vector<32x256xf32>
    %12 = arith.addf %11, %10 : vector<32x256xf32>
    %13 = vector.extract_strided_slice %4 {offsets = [0, 1], sizes = [32, 1], strides = [1, 1]} : vector<32x3xf32> to vector<32x1xf32>
    %14 = vector.extract_strided_slice %2 {offsets = [1, 0], sizes = [1, 256], strides = [1, 1]} : vector<3x256xf32> to vector<1x256xf32>
    %15 = vector.broadcast %13 : vector<32x1xf32> to vector<32x256xf32>
    %16 = vector.broadcast %14 : vector<1x256xf32> to vector<32x256xf32>
    %17 = arith.mulf %15, %16 : vector<32x256xf32>
    %18 = arith.addf %12, %17 : vector<32x256xf32>
    %19 = vector.extract_strided_slice %4 {offsets = [0, 2], sizes = [32, 1], strides = [1, 1]} : vector<32x3xf32> to vector<32x1xf32>
    %20 = vector.extract_strided_slice %2 {offsets = [2, 0], sizes = [1, 256], strides = [1, 1]} : vector<3x256xf32> to vector<1x256xf32>
    %21 = vector.broadcast %19 : vector<32x1xf32> to vector<32x256xf32>
    %22 = vector.broadcast %20 : vector<1x256xf32> to vector<32x256xf32>
    %23 = arith.mulf %21, %22 : vector<32x256xf32>
    %24 = arith.addf %18, %23 : vector<32x256xf32>
    %cst = arith.constant 0.000000e+00 : f32
    %25 = vector.broadcast %cst : f32 to vector<32x256xf32>
    %26 = arith.maximumf %24, %25 : vector<32x256xf32>
    %27 = arith.truncf %26 : vector<32x256xf32> to vector<32x256xbf16>
    %c0_6 = arith.constant 0 : index
    %c0_7 = arith.constant 0 : index
    %c0_8 = arith.constant 0 : index
    %28 = vector.load %arg5[%c0_6, %c0_7, %c0_8] : memref<1x32x256xbf16, #tpu.memory_space<vmem>>, vector<1x32x256xbf16>
    %29 = vector.shape_cast %28 : vector<1x32x256xbf16> to vector<32x256xbf16>
    %30 = vector.shape_cast %27 : vector<32x256xbf16> to vector<1x32x256xbf16>
    tpu.vector_store %arg5[%c0_6, %c0_7, %c0_8], %30 {strides = array<i32>} : memref<1x32x256xbf16, #tpu.memory_space<vmem>>, vector<1x32x256xbf16>,
    return
  }
  func.func @transform_0(%arg0: i32, %arg1: i32) -> (i32, i32, i32) {
    %c0_i32 = arith.constant 0 : i32
    %c0_i32_0 = arith.constant 0 : i32
    return %arg0, %c0_i32, %arg1 : i32, i32, i32
  }
  func.func @transform_1(%arg0: i32, %arg1: i32) -> (i32, i32) {
    %c0_i32 = arith.constant 0 : i32
    %c0_i32_0 = arith.constant 0 : i32
    %c0_i32_1 = arith.constant 0 : i32
    return %c0_i32, %c0_i32_0 : i32, i32
  }
  func.func @transform_2(%arg0: i32, %arg1: i32) -> (i32, i32) {
    %c0_i32 = arith.constant 0 : i32
    %c0_i32_0 = arith.constant 0 : i32
    %c0_i32_1 = arith.constant 0 : i32
    return %c0_i32, %c0_i32_0 : i32, i32
  }
  func.func @transform_3(%arg0: i32, %arg1: i32) -> (i32, i32, i32) {
    %c0_i32 = arith.constant 0 : i32
    %c0_i32_0 = arith.constant 0 : i32
    return %arg0, %c0_i32, %arg1 : i32, i32, i32
  }
}

</mosaic_0001>

<llo_original>
// kernel: _jit_extract.4
$region0: #{_jit_extract.4}
  #allocation0 [shape = 'u32[]', space=smem, size = 0x4, offset = 0x4, fixed_abs, tag = 'smem constant byte address 0x4 - core index']
  #allocation1 [shape = 'u32[144,128]{1,0:T(1,128)}', space=vmem, size = 0x12000, scoped, tag = 'internal scratch']
  %s0 = inlined_call_operand.vmem [shape: bf16[6,3,64], index: 0, kind: input, shape index: {}]
  %s1 = inlined_call_operand.vmem [shape: bf16[64,3], index: 1, kind: input, shape index: {}]
  %s2 = inlined_call_operand.vmem [shape: f32[64,1], index: 2, kind: input, shape index: {}]
  %s3 = inlined_call_operand.vmem [shape: bf16[6,64,64], index: 3, kind: output, shape index: {}]
  %s4 = sld [smem:[#allocation0]]
  $region45: #{_jit_extract.4} parent=0
    _
  %s6 = ssub.s32 1, %s4
  %s7 = scalar_select 0, %s6, %s4
  loop: start=0, step=1, limit=8
  $region2: #{_jit_extract.4} parent=0 // loop_pre_header
    _
  $region3: #{_jit_extract.4} parent=0 // loop_header
    %s9 = sphi 0, %s13
    %p10 = scmp.ge.s32.totalorder %s9, 8
    %s16 = sphi 0, %s28
    %s17 = sphi 0, %s24
    %s18 = sphi 0, %s16
    %s19 = sphi 0, %s17
    %s20 = sphi 0, %s18
    %s21 = sphi 0, %s19
    %s33 = sphi 0, %s35
    %s36 = sphi 0, %s33
    %s37 = sphi 0, %s36
    %s53 = sphi 0, %s37
    %s57 = sphi 0, %s57
    %s59 = sphi 0, %s57
    %s60 = sphi 0, %s59
    %s74 = sphi 0, %s60
    %s78 = sphi 0, %s78
    %s80 = sphi 0, %s78
    %s81 = sphi 0, %s80
    %s95 = sphi 0, %s81
    %s103 = sphi 0, %s105
    %s106 = sphi 0, %s103
    %s107 = sphi 0, %s106
    %s123 = sphi 0, %s107
  $region4: #{_jit_extract.4} parent=0 // loop_header_branch
    %12 = sbr.rel (%p10) target = $region8
  $region5: #{_jit_extract.4} parent=0 // loop_body
    %s14 = ssub.s32 %s9, 1
    %s15 = ssub.s32 %s9, 2
    %s22 = sadd.s32 1, %s17
    %p23 = scmp.ge.s32.totalorder %s22, 1
    %s24 = scalar_select %p23, 0, %s22
    %s25 = sadd.s32 1, %s16
    %s26 = scalar_select %p23, %s25, %s16
    %p27 = scmp.ge.s32.totalorder %s26, 6
    %s28 = scalar_select %p27, 0, %s26
    %s29 = ssub.s32 %s16, %s28
    %s30 = ssub.s32 %s17, %s24
    %s31 = sor.u32 %s29, %s30
    %p32 = scmp.eq.s32.totalorder %s31, 0
    %s34 = sadd.s32 %s33, 1
    %s35 = scalar_select %p32, %s33, %s34
    %p38 = pneg %p32
    %p39 = scmp.eq.s32.totalorder %s9, 5
    %p40 = por %p38, %p39
    %p41 = scmp.ne.s32.totalorder %s33, %s36
    %p42 = scmp.eq.s32.totalorder %s9, 0
    %p43 = por %p41, %p42
    %p44 = scmp.ne.s32.totalorder %s33, %s36
    %p45 = scmp.eq.s32.totalorder %s14, 5
    %p46 = por %p44, %p45
    %p47 = scmp.ne.s32.totalorder %s36, %s37
    %p48 = scmp.eq.s32.totalorder %s14, 0
    %p49 = por %p47, %p48
    %p50 = scmp.ne.s32.totalorder %s36, %s37
    %p51 = scmp.eq.s32.totalorder %s15, 5
    %p52 = por %p50, %p51
    %p54 = scmp.ne.s32.totalorder %s37, %s53
    %p55 = scmp.eq.s32.totalorder %s15, 0
    %p56 = por %p54, %p55
    %s58 = sadd.s32 %s57, 1
    %p61 = scmp.eq.s32.totalorder %s9, 5
    %p62 = scmp.ne.s32.totalorder %s57, %s59
    %p63 = scmp.eq.s32.totalorder %s9, 0
    %p64 = por %p62, %p63
    %p65 = scmp.ne.s32.totalorder %s57, %s59
    %p66 = scmp.eq.s32.totalorder %s14, 5
    %p67 = por %p65, %p66
    %p68 = scmp.ne.s32.totalorder %s59, %s60
    %p69 = scmp.eq.s32.totalorder %s14, 0
    %p70 = por %p68, %p69
    %p71 = scmp.ne.s32.totalorder %s59, %s60
    %p72 = scmp.eq.s32.totalorder %s15, 5
    %p73 = por %p71, %p72
    %p75 = scmp.ne.s32.totalorder %s60, %s74
    %p76 = scmp.eq.s32.totalorder %s15, 0
    %p77 = por %p75, %p76
    %s79 = sadd.s32 %s78, 1
    %p82 = scmp.eq.s32.totalorder %s9, 5
    %p83 = scmp.ne.s32.totalorder %s78, %s80
    %p84 = scmp.eq.s32.totalorder %s9, 0
    %p85 = por %p83, %p84
    %p86 = scmp.ne.s32.totalorder %s78, %s80
    %p87 = scmp.eq.s32.totalorder %s14, 5
    %p88 = por %p86, %p87
    %p89 = scmp.ne.s32.totalorder %s80, %s81
    %p90 = scmp.eq.s32.totalorder %s14, 0
    %p91 = por %p89, %p90
    %p92 = scmp.ne.s32.totalorder %s80, %s81
    %p93 = scmp.eq.s32.totalorder %s15, 5
    %p94 = por %p92, %p93
    %p96 = scmp.ne.s32.totalorder %s81, %s95
    %p97 = scmp.eq.s32.totalorder %s15, 0
    %p98 = por %p96, %p97
    %s99 = ssub.s32 %s16, %s28
    %s100 = ssub.s32 %s17, %s24
    %s101 = sor.u32 %s99, %s100
    %p102 = scmp.eq.s32.totalorder %s101, 0
    %s104 = sadd.s32 %s103, 1
    %s105 = scalar_select %p102, %s103, %s104
    %p108 = pneg %p102
    %p109 = scmp.eq.s32.totalorder %s9, 5
    %p110 = por %p108, %p109
    %p111 = scmp.ne.s32.totalorder %s103, %s106
    %p112 = scmp.eq.s32.totalorder %s9, 0
    %p113 = por %p111, %p112
    %p114 = scmp.ne.s32.totalorder %s103, %s106
    %p115 = scmp.eq.s32.totalorder %s14, 5
    %p116 = por %p114, %p115
    %p117 = scmp.ne.s32.totalorder %s106, %s107
    %p118 = scmp.eq.s32.totalorder %s14, 0
    %p119 = por %p117, %p118
    %p120 = scmp.ne.s32.totalorder %s106, %s107
    %p121 = scmp.eq.s32.totalorder %s15, 5
    %p122 = por %p120, %p121
    %p124 = scmp.ne.s32.totalorder %s107, %s123
    %p125 = scmp.eq.s32.totalorder %s15, 0
    %p126 = por %p124, %p125
    %p127 = scmp.le.s32.totalorder 1, %s9
    %p128 = scmp.lt.s32.totalorder %s9, 7
    %p129 = pnand %p127, %p128
    %p130 = pneg %p129
    // Predicated region
    $region9: #{_jit_extract.4} parent=5 // pred_check
      _
    $region10: #{_jit_extract.4} parent=5 // pred_check_branch
      %132 = sbr.rel (%p129) target = $region12
    $region11: #{_jit_extract.4} parent=5 // pred_region
      %s133 = ssub.s32 %s9, 1
      // Predicated region
      $region13: #{_jit_extract.4} parent=11 // pred_check
        %p134 = pneg %p70
      $region14: #{_jit_extract.4} parent=11 // pred_check_branch
        %136 = sbr.rel (%p134) target = $region16
      $region15: #{_jit_extract.4} parent=11 // pred_region
        _
      $region16: #{_jit_extract.4} parent=11 // pred_fallthru
        _
      // Predicated region
      $region17: #{_jit_extract.4} parent=11 // pred_check
        %p137 = pneg %p91
      $region18: #{_jit_extract.4} parent=11 // pred_check_branch
        %139 = sbr.rel (%p137) target = $region20
      $region19: #{_jit_extract.4} parent=11 // pred_region
        _
      $region20: #{_jit_extract.4} parent=11 // pred_fallthru
        _
    $region12: #{_jit_extract.4} parent=5 // pred_fallthru
      _
    %p140 = scmp.lt.s32.totalorder %s9, 6
    // Predicated region
    $region21: #{_jit_extract.4} parent=5 // pred_check
      %p141 = pneg %p140
    $region22: #{_jit_extract.4} parent=5 // pred_check_branch
      %143 = sbr.rel (%p141) target = $region24
    $region23: #{_jit_extract.4} parent=5 // pred_region
      // Predicated region
      $region25: #{_jit_extract.4} parent=23 // pred_check
        %p144 = pneg %p43
      $region26: #{_jit_extract.4} parent=23 // pred_check_branch
        %146 = sbr.rel (%p144) target = $region28
      $region27: #{_jit_extract.4} parent=23 // pred_region
        %p147 = scmp.lt.s32.totalorder %s16, 5
        %s148 = scalar_select %p147, %s16, 5
        %p149 = scmp.lt.s32.totalorder %s17, 0
        %s150 = scalar_select %p149, %s17, 0
        %s151 = sadd.s32 %s150, %s148
        %s152 = smul.addr %s151, 2
        %s153 = scalar_lea.vmem %s0, %s152
      $region28: #{_jit_extract.4} parent=23 // pred_fallthru
        _
    $region24: #{_jit_extract.4} parent=5 // pred_fallthru
      _
    %p154 = scmp.le.s32.totalorder 1, %s9
    %p155 = scmp.lt.s32.totalorder %s9, 7
    %p156 = pnand %p154, %p155
    %p157 = pneg %p156
    // Predicated region
    $region29: #{_jit_extract.4} parent=5 // pred_check
      _
    $region30: #{_jit_extract.4} parent=5 // pred_check_branch
      %159 = sbr.rel (%p156) target = $region32
    $region31: #{_jit_extract.4} parent=5 // pred_region
      %s160 = ssub.s32 %s9, 1
      %p161 = scmp.lt.s32.totalorder %s18, 5
      %s162 = scalar_select %p161, %s18, 5
      %p163 = scmp.lt.s32.totalorder %s19, 0
      %s164 = scalar_select %p163, %s19, 0
      %s165 = sadd.s32 %s164, %s162
      %s166 = smul.addr %s165, 2
      %s167 = scalar_lea.vmem %s0, %s166
      %p168 = pneg %p49
      %p169 = pneg %p46
      %p170 = pneg %p70
      %p171 = pneg %p67
      %p172 = pneg %p91
      %p173 = pneg %p88
      %p174 = pneg %p119
      %p175 = pneg %p116
      %p176 = scmp.lt.s32.totalorder %s18, 5
      %s177 = scalar_select %p176, %s18, 5
      %p178 = scmp.lt.s32.totalorder %s19, 0
      %s179 = scalar_select %p178, %s19, 0
      %s180 = smul.addr %s177, 8
      %s181 = sadd.s32 %s179, %s180
      %s182 = smul.addr %s181, 4
      %s183 = scalar_lea.vmem %s3, %s182
      %p184 = scmp.lt.s32.totalorder %s18, 5
      %s185 = scalar_select %p184, %s18, 5
      %p186 = scmp.lt.s32.totalorder %s19, 0
      %s187 = scalar_select %p186, %s19, 0
      %s188 = sadd.s32 %s187, %s185
      %s189 = smul.addr %s188, 2
      %s190 = scalar_lea.vmem %s0, %s189
      %p191 = scmp.lt.s32.totalorder %s18, 5
      %s192 = scalar_select %p191, %s18, 5
      %p193 = scmp.lt.s32.totalorder %s19, 0
      %s194 = scalar_select %p193, %s19, 0
      %s195 = smul.addr %s192, 8
      %s196 = sadd.s32 %s194, %s195
      %s197 = smul.addr %s196, 4
      %s198 = scalar_lea.vmem %s3, %s197
      %v199 = vld [vmem:[%s190] sm:$0x3]
      %v200 = vunpack.c.l.bf16 %v199
      %v201 = vld [vmem:[%s1] sm:$0xf]
      %v202 = vld [vmem:[%s1 + $0x4] sm:$0xf]
      %v203 = vld [vmem:[%s1 + $0x8] sm:$0xf]
      %v204 = vld [vmem:[%s1 + $0xc] sm:$0xf]
      %v205 = vld [vmem:[%s1 + $0x10] sm:$0xf]
      %v206 = vld [vmem:[%s1 + $0x14] sm:$0xf]
      %v207 = vld [vmem:[%s1 + $0x18] sm:$0xf]
      %v208 = vld [vmem:[%s1 + $0x1c] sm:$0xf]
      %v209 = vunpack.c.l.bf16 %v201
      %v210 = vunpack.c.l.bf16 %v202
      %v211 = vunpack.c.l.bf16 %v203
      %v212 = vunpack.c.l.bf16 %v204
      %v213 = vunpack.c.l.bf16 %v205
      %v214 = vunpack.c.l.bf16 %v206
      %v215 = vunpack.c.l.bf16 %v207
      %v216 = vunpack.c.l.bf16 %v208
      %v217 = vld [vmem:[%s2] sm:$0xff]
      %v218 = vld [vmem:[%s2 + $0x8] sm:$0xff]
      %v219 = vld [vmem:[%s2 + $0x10] sm:$0xff]
      %v220 = vld [vmem:[%s2 + $0x18] sm:$0xff]
      %v221 = vld [vmem:[%s2 + $0x20] sm:$0xff]
      %v222 = vld [vmem:[%s2 + $0x28] sm:$0xff]
      %v223 = vld [vmem:[%s2 + $0x30] sm:$0xff]
      %v224 = vld [vmem:[%s2 + $0x38] sm:$0xff]
      %226 = vset.pattern.permute.xlu0 0
      %227 = vperm.xlu0 %226, %v209
      %v228 = vpop.permute.xlu0 %227
      %231 = vset.pattern.permute.xlu0 0
      %232 = vperm.xlu0 %231, %v210
      %v233 = vpop.permute.xlu0 %232
      %236 = vset.pattern.permute.xlu0 0
      %237 = vperm.xlu0 %236, %v211
      %v238 = vpop.permute.xlu0 %237
      %241 = vset.pattern.permute.xlu0 0
      %242 = vperm.xlu0 %241, %v212
      %v243 = vpop.permute.xlu0 %242
      %246 = vset.pattern.permute.xlu0 0
      %247 = vperm.xlu0 %246, %v213
      %v248 = vpop.permute.xlu0 %247
      %251 = vset.pattern.permute.xlu0 0
      %252 = vperm.xlu0 %251, %v214
      %v253 = vpop.permute.xlu0 %252
      %256 = vset.pattern.permute.xlu0 0
      %257 = vperm.xlu0 %256, %v215
      %v258 = vpop.permute.xlu0 %257
      %261 = vset.pattern.permute.xlu0 0
      %262 = vperm.xlu0 %261, %v216
      %v263 = vpop.permute.xlu0 %262
      %v265 = vlaneseq
      %v266 = vshrl.u32 %v265, 7
      %v267 = vsub.s32 0, %v266
      %v268 = vrot.slane %v200, %v267
      %v269 = vmul.f32 %v228, %v268
      %v270 = vmul.f32 %v233, %v268
      %v271 = vmul.f32 %v238, %v268
      %v272 = vmul.f32 %v243, %v268
      %v273 = vmul.f32 %v248, %v268
      %v274 = vmul.f32 %v253, %v268
      %v275 = vmul.f32 %v258, %v268
      %v276 = vmul.f32 %v263, %v268
      %278 = vset.pattern.permute.xlu0 0
      %279 = vperm.xlu0 %278, %v217
      %v280 = vpop.permute.xlu0 %279
      %283 = vset.pattern.permute.xlu0 0
      %284 = vperm.xlu0 %283, %v218
      %v285 = vpop.permute.xlu0 %284
      %288 = vset.pattern.permute.xlu0 0
      %289 = vperm.xlu0 %288, %v219
      %v290 = vpop.permute.xlu0 %289
      %293 = vset.pattern.permute.xlu0 0
      %294 = vperm.xlu0 %293, %v220
      %v295 = vpop.permute.xlu0 %294
      %298 = vset.pattern.permute.xlu0 0
      %299 = vperm.xlu0 %298, %v221
      %v300 = vpop.permute.xlu0 %299
      %303 = vset.pattern.permute.xlu0 0
      %304 = vperm.xlu0 %303, %v222
      %v305 = vpop.permute.xlu0 %304
      %308 = vset.pattern.permute.xlu0 0
      %309 = vperm.xlu0 %308, %v223
      %v310 = vpop.permute.xlu0 %309
      %313 = vset.pattern.permute.xlu0 0
      %314 = vperm.xlu0 %313, %v224
      %v315 = vpop.permute.xlu0 %314
      %v317 = vadd.f32 %v280, %v269
      %v318 = vadd.f32 %v285, %v270
      %v319 = vadd.f32 %v290, %v271
      %v320 = vadd.f32 %v295, %v272
      %v321 = vadd.f32 %v300, %v273
      %v322 = vadd.f32 %v305, %v274
      %v323 = vadd.f32 %v310, %v275
      %v324 = vadd.f32 %v315, %v276
      %325 = vset.pattern.permute.xlu0 1
      %326 = vperm.xlu0 %325, %v209
      %v327 = vpop.permute.xlu0 %326
      %329 = vset.pattern.permute.xlu0 1
      %330 = vperm.xlu0 %329, %v210
      %v331 = vpop.permute.xlu0 %330
      %333 = vset.pattern.permute.xlu0 1
      %334 = vperm.xlu0 %333, %v211
      %v335 = vpop.permute.xlu0 %334
      %337 = vset.pattern.permute.xlu0 1
      %338 = vperm.xlu0 %337, %v212
      %v339 = vpop.permute.xlu0 %338
      %341 = vset.pattern.permute.xlu0 1
      %342 = vperm.xlu0 %341, %v213
      %v343 = vpop.permute.xlu0 %342
      %345 = vset.pattern.permute.xlu0 1
      %346 = vperm.xlu0 %345, %v214
      %v347 = vpop.permute.xlu0 %346
      %349 = vset.pattern.permute.xlu0 1
      %350 = vperm.xlu0 %349, %v215
      %v351 = vpop.permute.xlu0 %350
      %353 = vset.pattern.permute.xlu0 1
      %354 = vperm.xlu0 %353, %v216
      %v355 = vpop.permute.xlu0 %354
      %v357 = vlaneseq
      %v358 = vshrl.u32 %v357, 7
      %v359 = vsub.s32 1, %v358
      %v360 = vrot.slane %v200, %v359
      %v361 = vmul.f32 %v327, %v360
      %v362 = vmul.f32 %v331, %v360
      %v363 = vmul.f32 %v335, %v360
      %v364 = vmul.f32 %v339, %v360
      %v365 = vmul.f32 %v343, %v360
      %v366 = vmul.f32 %v347, %v360
      %v367 = vmul.f32 %v351, %v360
      %v368 = vmul.f32 %v355, %v360
      %v369 = vadd.f32 %v317, %v361
      %v370 = vadd.f32 %v318, %v362
      %v371 = vadd.f32 %v319, %v363
      %v372 = vadd.f32 %v320, %v364
      %v373 = vadd.f32 %v321, %v365
      %v374 = vadd.f32 %v322, %v366
      %v375 = vadd.f32 %v323, %v367
      %v376 = vadd.f32 %v324, %v368
      %377 = vset.pattern.permute.xlu0 2
      %378 = vperm.xlu0 %377, %v209
      %v379 = vpop.permute.xlu0 %378
      %381 = vset.pattern.permute.xlu0 2
      %382 = vperm.xlu0 %381, %v210
      %v383 = vpop.permute.xlu0 %382
      %385 = vset.pattern.permute.xlu0 2
      %386 = vperm.xlu0 %385, %v211
      %v387 = vpop.permute.xlu0 %386
      %389 = vset.pattern.permute.xlu0 2
      %390 = vperm.xlu0 %389, %v212
      %v391 = vpop.permute.xlu0 %390
      %393 = vset.pattern.permute.xlu0 2
      %394 = vperm.xlu0 %393, %v213
      %v395 = vpop.permute.xlu0 %394
      %397 = vset.pattern.permute.xlu0 2
      %398 = vperm.xlu0 %397, %v214
      %v399 = vpop.permute.xlu0 %398
      %401 = vset.pattern.permute.xlu0 2
      %402 = vperm.xlu0 %401, %v215
      %v403 = vpop.permute.xlu0 %402
      %405 = vset.pattern.permute.xlu0 2
      %406 = vperm.xlu0 %405, %v216
      %v407 = vpop.permute.xlu0 %406
      %v409 = vlaneseq
      %v410 = vshrl.u32 %v409, 7
      %v411 = vsub.s32 2, %v410
      %v412 = vrot.slane %v200, %v411
      %v413 = vmul.f32 %v379, %v412
      %v414 = vmul.f32 %v383, %v412
      %v415 = vmul.f32 %v387, %v412
      %v416 = vmul.f32 %v391, %v412
      %v417 = vmul.f32 %v395, %v412
      %v418 = vmul.f32 %v399, %v412
      %v419 = vmul.f32 %v403, %v412
      %v420 = vmul.f32 %v407, %v412
      %v421 = vadd.f32 %v369, %v413
      %v422 = vadd.f32 %v370, %v414
      %v423 = vadd.f32 %v371, %v415
      %v424 = vadd.f32 %v372, %v416
      %v425 = vadd.f32 %v373, %v417
      %v426 = vadd.f32 %v374, %v418
      %v427 = vadd.f32 %v375, %v419
      %v428 = vadd.f32 %v376, %v420
      %v429 = vmax.f32 %v421, 0.0
      %v430 = vmax.f32 %v422, 0.0
      %v431 = vmax.f32 %v423, 0.0
      %v432 = vmax.f32 %v424, 0.0
      %v433 = vmax.f32 %v425, 0.0
      %v434 = vmax.f32 %v426, 0.0
      %v435 = vmax.f32 %v427, 0.0
      %v436 = vmax.f32 %v428, 0.0
      %v437 = vpack.c.bf16 %v430, %v429
      %v438 = vpack.c.bf16 %v432, %v431
      %v439 = vpack.c.bf16 %v434, %v433
      %v440 = vpack.c.bf16 %v436, %v435
      %v445 = vunpack.c.l.b16 %v437
      %v446 = vunpack.c.h.b16 %v437
      %v447 = vunpack.c.l.b16 %v438
      %v448 = vunpack.c.h.b16 %v438
      %v449 = vunpack.c.l.b16 %v439
      %v450 = vunpack.c.h.b16 %v439
      %v451 = vunpack.c.l.b16 %v440
      %v452 = vunpack.c.h.b16 %v440
      %v453 = vpack.c.b16 %v445, %v445
      %v454 = vpack.c.b16 %v446, %v446
      %v455 = vpack.c.b16 %v447, %v447
      %v456 = vpack.c.b16 %v448, %v448
      %v457 = vpack.c.b16 %v449, %v449
      %v458 = vpack.c.b16 %v450, %v450
      %v459 = vpack.c.b16 %v451, %v451
      %v460 = vpack.c.b16 %v452, %v452
      %vm469 = vcmask 519168
      %470 = vst.msk [vmem:[%s198] sm:$0xf] %vm469, %v453
      %471 = vst.msk [vmem:[%s198 + $0x4] sm:$0xf] %vm469, %v454
      %472 = vst.msk [vmem:[%s198 + $0x8] sm:$0xf] %vm469, %v455
      %473 = vst.msk [vmem:[%s198 + $0xc] sm:$0xf] %vm469, %v456
      %474 = vst.msk [vmem:[%s198 + $0x10] sm:$0xf] %vm469, %v457
      %475 = vst.msk [vmem:[%s198 + $0x14] sm:$0xf] %vm469, %v458
      %476 = vst.msk [vmem:[%s198 + $0x18] sm:$0xf] %vm469, %v459
      %477 = vst.msk [vmem:[%s198 + $0x1c] sm:$0xf] %vm469, %v460
      %p478 = scmp.lt.s32.totalorder %s18, 5
      %s479 = scalar_select %p478, %s18, 5
      %p480 = scmp.lt.s32.totalorder %s19, 0
      %s481 = scalar_select %p480, %s19, 0
      %s482 = smul.addr %s479, 8
      %s483 = sadd.s32 %s481, %s482
      %s484 = smul.addr %s483, 4
      %s485 = scalar_lea.vmem %s3, %s484
      // Predicated region
      $region33: #{_jit_extract.4} parent=31 // pred_check
        %p486 = pneg %p116
      $region34: #{_jit_extract.4} parent=31 // pred_check_branch
        %488 = sbr.rel (%p486) target = $region36
      $region35: #{_jit_extract.4} parent=31 // pred_region
        _
      $region36: #{_jit_extract.4} parent=31 // pred_fallthru
        _
    $region32: #{_jit_extract.4} parent=5 // pred_fallthru
      _
    %p489 = scmp.le.s32.totalorder 2, %s9
    // Predicated region
    $region37: #{_jit_extract.4} parent=5 // pred_check
      %p490 = pneg %p489
    $region38: #{_jit_extract.4} parent=5 // pred_check_branch
      %492 = sbr.rel (%p490) target = $region40
    $region39: #{_jit_extract.4} parent=5 // pred_region
      %s493 = ssub.s32 %s9, 2
      // Predicated region
      $region41: #{_jit_extract.4} parent=39 // pred_check
        %p494 = pneg %p122
      $region42: #{_jit_extract.4} parent=39 // pred_check_branch
        %496 = sbr.rel (%p494) target = $region44
      $region43: #{_jit_extract.4} parent=39 // pred_region
        %p497 = scmp.lt.s32.totalorder %s20, 5
        %s498 = scalar_select %p497, %s20, 5
        %p499 = scmp.lt.s32.totalorder %s21, 0
        %s500 = scalar_select %p499, %s21, 0
        %s501 = smul.addr %s498, 8
        %s502 = sadd.s32 %s500, %s501
        %s503 = smul.addr %s502, 4
        %s504 = scalar_lea.vmem %s3, %s503
      $region44: #{_jit_extract.4} parent=39 // pred_fallthru
        _
    $region40: #{_jit_extract.4} parent=5 // pred_fallthru
      _
  $region6: #{_jit_extract.4} parent=0 // loop_footer
    %s13 = sadd.s32 1, %s9
  $region7: #{_jit_extract.4} parent=0 // loop_footer_branch
    %8 = sbr.rel target = $region3
  $region8: #{_jit_extract.4} parent=0 // loop_exit
    _

// kernel: _jit_extract.5
$region0: #{_jit_extract.5}
  #allocation0 [shape = 'u32[]', space=smem, size = 0x4, offset = 0x4, fixed_abs, tag = 'smem constant byte address 0x4 - core index']
  #allocation1 [shape = 'u32[144,128]{1,0:T(1,128)}', space=vmem, size = 0x12000, scoped, tag = 'internal scratch']
  %s0 = inlined_call_operand.vmem [shape: bf16[6,3,16], index: 0, kind: input, shape index: {}]
  %s1 = inlined_call_operand.vmem [shape: bf16[128,3], index: 1, kind: input, shape index: {}]
  %s2 = inlined_call_operand.vmem [shape: f32[128,1], index: 2, kind: input, shape index: {}]
  %s3 = inlined_call_operand.vmem [shape: bf16[32,128], index: 3, kind: input, shape index: {}]
  %s4 = inlined_call_operand.vmem [shape: f32[32,1], index: 4, kind: input, shape index: {}]
  %s5 = inlined_call_operand.vmem [shape: bf16[6,128,16], index: 5, kind: output, shape index: {0}]
  %s6 = inlined_call_operand.vmem [shape: bf16[6,32,16], index: 6, kind: output, shape index: {1}]
  %7 = xla_tuple %s5, %s6
  %s8 = sld [smem:[#allocation0]]
  $region61: #{_jit_extract.5} parent=0
    _
  %s10 = ssub.s32 1, %s8
  %s11 = scalar_select 0, %s10, %s8
  loop: start=0, step=1, limit=8
  $region2: #{_jit_extract.5} parent=0 // loop_pre_header
    _
  $region3: #{_jit_extract.5} parent=0 // loop_header
    %s13 = sphi 0, %s17
    %p14 = scmp.ge.s32.totalorder %s13, 8
    %s20 = sphi 0, %s32
    %s21 = sphi 0, %s28
    %s22 = sphi 0, %s20
    %s23 = sphi 0, %s21
    %s24 = sphi 0, %s22
    %s25 = sphi 0, %s23
    %s37 = sphi 0, %s39
    %s40 = sphi 0, %s37
    %s41 = sphi 0, %s40
    %s57 = sphi 0, %s41
    %s61 = sphi 0, %s61
    %s63 = sphi 0, %s61
    %s64 = sphi 0, %s63
    %s78 = sphi 0, %s64
    %s82 = sphi 0, %s82
    %s84 = sphi 0, %s82
    %s85 = sphi 0, %s84
    %s99 = sphi 0, %s85
    %s103 = sphi 0, %s103
    %s105 = sphi 0, %s103
    %s106 = sphi 0, %s105
    %s120 = sphi 0, %s106
    %s124 = sphi 0, %s124
    %s126 = sphi 0, %s124
    %s127 = sphi 0, %s126
    %s141 = sphi 0, %s127
    %s149 = sphi 0, %s151
    %s152 = sphi 0, %s149
    %s153 = sphi 0, %s152
    %s169 = sphi 0, %s153
    %s177 = sphi 0, %s179
    %s180 = sphi 0, %s177
    %s181 = sphi 0, %s180
    %s197 = sphi 0, %s181
  $region4: #{_jit_extract.5} parent=0 // loop_header_branch
    %16 = sbr.rel (%p14) target = $region8
  $region5: #{_jit_extract.5} parent=0 // loop_body
    %s18 = ssub.s32 %s13, 1
    %s19 = ssub.s32 %s13, 2
    %s26 = sadd.s32 1, %s21
    %p27 = scmp.ge.s32.totalorder %s26, 1
    %s28 = scalar_select %p27, 0, %s26
    %s29 = sadd.s32 1, %s20
    %s30 = scalar_select %p27, %s29, %s20
    %p31 = scmp.ge.s32.totalorder %s30, 6
    %s32 = scalar_select %p31, 0, %s30
    %s33 = ssub.s32 %s20, %s32
    %s34 = ssub.s32 %s21, %s28
    %s35 = sor.u32 %s33, %s34
    %p36 = scmp.eq.s32.totalorder %s35, 0
    %s38 = sadd.s32 %s37, 1
    %s39 = scalar_select %p36, %s37, %s38
    %p42 = pneg %p36
    %p43 = scmp.eq.s32.totalorder %s13, 5
    %p44 = por %p42, %p43
    %p45 = scmp.ne.s32.totalorder %s37, %s40
    %p46 = scmp.eq.s32.totalorder %s13, 0
    %p47 = por %p45, %p46
    %p48 = scmp.ne.s32.totalorder %s37, %s40
    %p49 = scmp.eq.s32.totalorder %s18, 5
    %p50 = por %p48, %p49
    %p51 = scmp.ne.s32.totalorder %s40, %s41
    %p52 = scmp.eq.s32.totalorder %s18, 0
    %p53 = por %p51, %p52
    %p54 = scmp.ne.s32.totalorder %s40, %s41
    %p55 = scmp.eq.s32.totalorder %s19, 5
    %p56 = por %p54, %p55
    %p58 = scmp.ne.s32.totalorder %s41, %s57
    %p59 = scmp.eq.s32.totalorder %s19, 0
    %p60 = por %p58, %p59
    %s62 = sadd.s32 %s61, 1
    %p65 = scmp.eq.s32.totalorder %s13, 5
    %p66 = scmp.ne.s32.totalorder %s61, %s63
    %p67 = scmp.eq.s32.totalorder %s13, 0
    %p68 = por %p66, %p67
    %p69 = scmp.ne.s32.totalorder %s61, %s63
    %p70 = scmp.eq.s32.totalorder %s18, 5
    %p71 = por %p69, %p70
    %p72 = scmp.ne.s32.totalorder %s63, %s64
    %p73 = scmp.eq.s32.totalorder %s18, 0
    %p74 = por %p72, %p73
    %p75 = scmp.ne.s32.totalorder %s63, %s64
    %p76 = scmp.eq.s32.totalorder %s19, 5
    %p77 = por %p75, %p76
    %p79 = scmp.ne.s32.totalorder %s64, %s78
    %p80 = scmp.eq.s32.totalorder %s19, 0
    %p81 = por %p79, %p80
    %s83 = sadd.s32 %s82, 1
    %p86 = scmp.eq.s32.totalorder %s13, 5
    %p87 = scmp.ne.s32.totalorder %s82, %s84
    %p88 = scmp.eq.s32.totalorder %s13, 0
    %p89 = por %p87, %p88
    %p90 = scmp.ne.s32.totalorder %s82, %s84
    %p91 = scmp.eq.s32.totalorder %s18, 5
    %p92 = por %p90, %p91
    %p93 = scmp.ne.s32.totalorder %s84, %s85
    %p94 = scmp.eq.s32.totalorder %s18, 0
    %p95 = por %p93, %p94
    %p96 = scmp.ne.s32.totalorder %s84, %s85
    %p97 = scmp.eq.s32.totalorder %s19, 5
    %p98 = por %p96, %p97
    %p100 = scmp.ne.s32.totalorder %s85, %s99
    %p101 = scmp.eq.s32.totalorder %s19, 0
    %p102 = por %p100, %p101
    %s104 = sadd.s32 %s103, 1
    %p107 = scmp.eq.s32.totalorder %s13, 5
    %p108 = scmp.ne.s32.totalorder %s103, %s105
    %p109 = scmp.eq.s32.totalorder %s13, 0
    %p110 = por %p108, %p109
    %p111 = scmp.ne.s32.totalorder %s103, %s105
    %p112 = scmp.eq.s32.totalorder %s18, 5
    %p113 = por %p111, %p112
    %p114 = scmp.ne.s32.totalorder %s105, %s106
    %p115 = scmp.eq.s32.totalorder %s18, 0
    %p116 = por %p114, %p115
    %p117 = scmp.ne.s32.totalorder %s105, %s106
    %p118 = scmp.eq.s32.totalorder %s19, 5
    %p119 = por %p117, %p118
    %p121 = scmp.ne.s32.totalorder %s106, %s120
    %p122 = scmp.eq.s32.totalorder %s19, 0
    %p123 = por %p121, %p122
    %s125 = sadd.s32 %s124, 1
    %p128 = scmp.eq.s32.totalorder %s13, 5
    %p129 = scmp.ne.s32.totalorder %s124, %s126
    %p130 = scmp.eq.s32.totalorder %s13, 0
    %p131 = por %p129, %p130
    %p132 = scmp.ne.s32.totalorder %s124, %s126
    %p133 = scmp.eq.s32.totalorder %s18, 5
    %p134 = por %p132, %p133
    %p135 = scmp.ne.s32.totalorder %s126, %s127
    %p136 = scmp.eq.s32.totalorder %s18, 0
    %p137 = por %p135, %p136
    %p138 = scmp.ne.s32.totalorder %s126, %s127
    %p139 = scmp.eq.s32.totalorder %s19, 5
    %p140 = por %p138, %p139
    %p142 = scmp.ne.s32.totalorder %s127, %s141
    %p143 = scmp.eq.s32.totalorder %s19, 0
    %p144 = por %p142, %p143
    %s145 = ssub.s32 %s20, %s32
    %s146 = ssub.s32 %s21, %s28
    %s147 = sor.u32 %s145, %s146
    %p148 = scmp.eq.s32.totalorder %s147, 0
    %s150 = sadd.s32 %s149, 1
    %s151 = scalar_select %p148, %s149, %s150
    %p154 = pneg %p148
    %p155 = scmp.eq.s32.totalorder %s13, 5
    %p156 = por %p154, %p155
    %p157 = scmp.ne.s32.totalorder %s149, %s152
    %p158 = scmp.eq.s32.totalorder %s13, 0
    %p159 = por %p157, %p158
    %p160 = scmp.ne.s32.totalorder %s149, %s152
    %p161 = scmp.eq.s32.totalorder %s18, 5
    %p162 = por %p160, %p161
    %p163 = scmp.ne.s32.totalorder %s152, %s153
    %p164 = scmp.eq.s32.totalorder %s18, 0
    %p165 = por %p163, %p164
    %p166 = scmp.ne.s32.totalorder %s152, %s153
    %p167 = scmp.eq.s32.totalorder %s19, 5
    %p168 = por %p166, %p167
    %p170 = scmp.ne.s32.totalorder %s153, %s169
    %p171 = scmp.eq.s32.totalorder %s19, 0
    %p172 = por %p170, %p171
    %s173 = ssub.s32 %s20, %s32
    %s174 = ssub.s32 %s21, %s28
    %s175 = sor.u32 %s173, %s174
    %p176 = scmp.eq.s32.totalorder %s175, 0
    %s178 = sadd.s32 %s177, 1
    %s179 = scalar_select %p176, %s177, %s178
    %p182 = pneg %p176
    %p183 = scmp.eq.s32.totalorder %s13, 5
    %p184 = por %p182, %p183
    %p185 = scmp.ne.s32.totalorder %s177, %s180
    %p186 = scmp.eq.s32.totalorder %s13, 0
    %p187 = por %p185, %p186
    %p188 = scmp.ne.s32.totalorder %s177, %s180
    %p189 = scmp.eq.s32.totalorder %s18, 5
    %p190 = por %p188, %p189
    %p191 = scmp.ne.s32.totalorder %s180, %s181
    %p192 = scmp.eq.s32.totalorder %s18, 0
    %p193 = por %p191, %p192
    %p194 = scmp.ne.s32.totalorder %s180, %s181
    %p195 = scmp.eq.s32.totalorder %s19, 5
    %p196 = por %p194, %p195
    %p198 = scmp.ne.s32.totalorder %s181, %s197
    %p199 = scmp.eq.s32.totalorder %s19, 0
    %p200 = por %p198, %p199
    %p201 = scmp.le.s32.totalorder 1, %s13
    %p202 = scmp.lt.s32.totalorder %s13, 7
    %p203 = pnand %p201, %p202
    %p204 = pneg %p203
    // Predicated region
    $region9: #{_jit_extract.5} parent=5 // pred_check
      _
    $region10: #{_jit_extract.5} parent=5 // pred_check_branch
      %206 = sbr.rel (%p203) target = $region12
    $region11: #{_jit_extract.5} parent=5 // pred_region
      %s207 = ssub.s32 %s13, 1
      // Predicated region
      $region13: #{_jit_extract.5} parent=11 // pred_check
        %p208 = pneg %p74
      $region14: #{_jit_extract.5} parent=11 // pred_check_branch
        %210 = sbr.rel (%p208) target = $region16
      $region15: #{_jit_extract.5} parent=11 // pred_region
        _
      $region16: #{_jit_extract.5} parent=11 // pred_fallthru
        _
      // Predicated region
      $region17: #{_jit_extract.5} parent=11 // pred_check
        %p211 = pneg %p95
      $region18: #{_jit_extract.5} parent=11 // pred_check_branch
        %213 = sbr.rel (%p211) target = $region20
      $region19: #{_jit_extract.5} parent=11 // pred_region
        _
      $region20: #{_jit_extract.5} parent=11 // pred_fallthru
        _
      // Predicated region
      $region21: #{_jit_extract.5} parent=11 // pred_check
        %p214 = pneg %p116
      $region22: #{_jit_extract.5} parent=11 // pred_check_branch
        %216 = sbr.rel (%p214) target = $region24
      $region23: #{_jit_extract.5} parent=11 // pred_region
        _
      $region24: #{_jit_extract.5} parent=11 // pred_fallthru
        _
      // Predicated region
      $region25: #{_jit_extract.5} parent=11 // pred_check
        %p217 = pneg %p137
      $region26: #{_jit_extract.5} parent=11 // pred_check_branch
        %219 = sbr.rel (%p217) target = $region28
      $region27: #{_jit_extract.5} parent=11 // pred_region
        _
      $region28: #{_jit_extract.5} parent=11 // pred_fallthru
        _
    $region12: #{_jit_extract.5} parent=5 // pred_fallthru
      _
    %p220 = scmp.lt.s32.totalorder %s13, 6
    // Predicated region
    $region29: #{_jit_extract.5} parent=5 // pred_check
      %p221 = pneg %p220
    $region30: #{_jit_extract.5} parent=5 // pred_check_branch
      %223 = sbr.rel (%p221) target = $region32
    $region31: #{_jit_extract.5} parent=5 // pred_region
      // Predicated region
      $region33: #{_jit_extract.5} parent=31 // pred_check
        %p224 = pneg %p47
      $region34: #{_jit_extract.5} parent=31 // pred_check_branch
        %226 = sbr.rel (%p224) target = $region36
      $region35: #{_jit_extract.5} parent=31 // pred_region
        %p227 = scmp.lt.s32.totalorder %s20, 5
        %s228 = scalar_select %p227, %s20, 5
        %p229 = scmp.lt.s32.totalorder %s21, 0
        %s230 = scalar_select %p229, %s21, 0
        %s231 = sadd.s32 %s230, %s228
        %s232 = smul.addr %s231, 2
        %s233 = scalar_lea.vmem %s0, %s232
      $region36: #{_jit_extract.5} parent=31 // pred_fallthru
        _
    $region32: #{_jit_extract.5} parent=5 // pred_fallthru
      _
    %p234 = scmp.le.s32.totalorder 1, %s13
    %p235 = scmp.lt.s32.totalorder %s13, 7
    %p236 = pnand %p234, %p235
    %p237 = pneg %p236
    // Predicated region
    $region37: #{_jit_extract.5} parent=5 // pred_check
      _
    $region38: #{_jit_extract.5} parent=5 // pred_check_branch
      %239 = sbr.rel (%p236) target = $region40
    $region39: #{_jit_extract.5} parent=5 // pred_region
      %s240 = ssub.s32 %s13, 1
      %p241 = scmp.lt.s32.totalorder %s22, 5
      %s242 = scalar_select %p241, %s22, 5
      %p243 = scmp.lt.s32.totalorder %s23, 0
      %s244 = scalar_select %p243, %s23, 0
      %s245 = sadd.s32 %s244, %s242
      %s246 = smul.addr %s245, 2
      %s247 = scalar_lea.vmem %s0, %s246
      %p248 = pneg %p53
      %p249 = pneg %p50
      %p250 = pneg %p74
      %p251 = pneg %p71
      %p252 = pneg %p95
      %p253 = pneg %p92
      %p254 = pneg %p116
      %p255 = pneg %p113
      %p256 = pneg %p137
      %p257 = pneg %p134
      %p258 = pneg %p165
      %p259 = pneg %p162
      %p260 = scmp.lt.s32.totalorder %s22, 5
      %s261 = scalar_select %p260, %s22, 5
      %p262 = scmp.lt.s32.totalorder %s23, 0
      %s263 = scalar_select %p262, %s23, 0
      %s264 = smul.addr %s261, 16
      %s265 = sadd.s32 %s263, %s264
      %s266 = smul.addr %s265, 4
      %s267 = scalar_lea.vmem %s5, %s266
      %p268 = pneg %p193
      %p269 = pneg %p190
      %p270 = scmp.lt.s32.totalorder %s22, 5
      %s271 = scalar_select %p270, %s22, 5
      %p272 = scmp.lt.s32.totalorder %s23, 0
      %s273 = scalar_select %p272, %s23, 0
      %s274 = smul.addr %s271, 4
      %s275 = sadd.s32 %s273, %s274
      %s276 = smul.addr %s275, 4
      %s277 = scalar_lea.vmem %s6, %s276
      %p278 = scmp.lt.s32.totalorder %s22, 5
      %s279 = scalar_select %p278, %s22, 5
      %p280 = scmp.lt.s32.totalorder %s23, 0
      %s281 = scalar_select %p280, %s23, 0
      %s282 = sadd.s32 %s281, %s279
      %s283 = smul.addr %s282, 2
      %s284 = scalar_lea.vmem %s0, %s283
      %p285 = scmp.lt.s32.totalorder %s22, 5
      %s286 = scalar_select %p285, %s22, 5
      %p287 = scmp.lt.s32.totalorder %s23, 0
      %s288 = scalar_select %p287, %s23, 0
      %s289 = smul.addr %s286, 16
      %s290 = sadd.s32 %s288, %s289
      %s291 = smul.addr %s290, 4
      %s292 = scalar_lea.vmem %s5, %s291
      %p293 = scmp.lt.s32.totalorder %s22, 5
      %s294 = scalar_select %p293, %s22, 5
      %p295 = scmp.lt.s32.totalorder %s23, 0
      %s296 = scalar_select %p295, %s23, 0
      %s297 = smul.addr %s294, 4
      %s298 = sadd.s32 %s296, %s297
      %s299 = smul.addr %s298, 4
      %s300 = scalar_lea.vmem %s6, %s299
      %v302 = vld [vmem:[%s284] sm:$0x3]
      %v303 = vunpack.c.l.bf16 %v302
      %v304 = vld [vmem:[%s1] sm:$0xf]
      %v305 = vld [vmem:[%s1 + $0x4] sm:$0xf]
      %v306 = vld [vmem:[%s1 + $0x8] sm:$0xf]
      %v307 = vld [vmem:[%s1 + $0xc] sm:$0xf]
      %v308 = vld [vmem:[%s1 + $0x10] sm:$0xf]
      %v309 = vld [vmem:[%s1 + $0x14] sm:$0xf]
      %v310 = vld [vmem:[%s1 + $0x18] sm:$0xf]
      %v311 = vld [vmem:[%s1 + $0x1c] sm:$0xf]
      %v312 = vld [vmem:[%s1 + $0x20] sm:$0xf]
      %v313 = vld [vmem:[%s1 + $0x24] sm:$0xf]
      %v314 = vld [vmem:[%s1 + $0x28] sm:$0xf]
      %v315 = vld [vmem:[%s1 + $0x2c] sm:$0xf]
      %v316 = vld [vmem:[%s1 + $0x30] sm:$0xf]
      %v317 = vld [vmem:[%s1 + $0x34] sm:$0xf]
      %v318 = vld [vmem:[%s1 + $0x38] sm:$0xf]
      %v319 = vld [vmem:[%s1 + $0x3c] sm:$0xf]
      %v320 = vunpack.c.l.bf16 %v304
      %v321 = vunpack.c.l.bf16 %v305
      %v322 = vunpack.c.l.bf16 %v306
      %v323 = vunpack.c.l.bf16 %v307
      %v324 = vunpack.c.l.bf16 %v308
      %v325 = vunpack.c.l.bf16 %v309
      %v326 = vunpack.c.l.bf16 %v310
      %v327 = vunpack.c.l.bf16 %v311
      %v328 = vunpack.c.l.bf16 %v312
      %v329 = vunpack.c.l.bf16 %v313
      %v330 = vunpack.c.l.bf16 %v314
      %v331 = vunpack.c.l.bf16 %v315
      %v332 = vunpack.c.l.bf16 %v316
      %v333 = vunpack.c.l.bf16 %v317
      %v334 = vunpack.c.l.bf16 %v318
      %v335 = vunpack.c.l.bf16 %v319
      %v336 = vld [vmem:[%s2] sm:$0xff]
      %v337 = vld [vmem:[%s2 + $0x8] sm:$0xff]
      %v338 = vld [vmem:[%s2 + $0x10] sm:$0xff]
      %v339 = vld [vmem:[%s2 + $0x18] sm:$0xff]
      %v340 = vld [vmem:[%s2 + $0x20] sm:$0xff]
      %v341 = vld [vmem:[%s2 + $0x28] sm:$0xff]
      %v342 = vld [vmem:[%s2 + $0x30] sm:$0xff]
      %v343 = vld [vmem:[%s2 + $0x38] sm:$0xff]
      %v344 = vld [vmem:[%s2 + $0x40] sm:$0xff]
      %v345 = vld [vmem:[%s2 + $0x48] sm:$0xff]
      %v346 = vld [vmem:[%s2 + $0x50] sm:$0xff]
      %v347 = vld [vmem:[%s2 + $0x58] sm:$0xff]
      %v348 = vld [vmem:[%s2 + $0x60] sm:$0xff]
      %v349 = vld [vmem:[%s2 + $0x68] sm:$0xff]
      %v350 = vld [vmem:[%s2 + $0x70] sm:$0xff]
      %v351 = vld [vmem:[%s2 + $0x78] sm:$0xff]
      %353 = vset.pattern.permute.xlu0 0
      %354 = vperm.xlu0 %353, %v320
      %v355 = vpop.permute.xlu0 %354
      %358 = vset.pattern.permute.xlu0 0
      %359 = vperm.xlu0 %358, %v321
      %v360 = vpop.permute.xlu0 %359
      %363 = vset.pattern.permute.xlu0 0
      %364 = vperm.xlu0 %363, %v322
      %v365 = vpop.permute.xlu0 %364
      %368 = vset.pattern.permute.xlu0 0
      %369 = vperm.xlu0 %368, %v323
      %v370 = vpop.permute.xlu0 %369
      %373 = vset.pattern.permute.xlu0 0
      %374 = vperm.xlu0 %373, %v324
      %v375 = vpop.permute.xlu0 %374
      %378 = vset.pattern.permute.xlu0 0
      %379 = vperm.xlu0 %378, %v325
      %v380 = vpop.permute.xlu0 %379
      %383 = vset.pattern.permute.xlu0 0
      %384 = vperm.xlu0 %383, %v326
      %v385 = vpop.permute.xlu0 %384
      %388 = vset.pattern.permute.xlu0 0
      %389 = vperm.xlu0 %388, %v327
      %v390 = vpop.permute.xlu0 %389
      %393 = vset.pattern.permute.xlu0 0
      %394 = vperm.xlu0 %393, %v328
      %v395 = vpop.permute.xlu0 %394
      %398 = vset.pattern.permute.xlu0 0
      %399 = vperm.xlu0 %398, %v329
      %v400 = vpop.permute.xlu0 %399
      %403 = vset.pattern.permute.xlu0 0
      %404 = vperm.xlu0 %403, %v330
      %v405 = vpop.permute.xlu0 %404
      %408 = vset.pattern.permute.xlu0 0
      %409 = vperm.xlu0 %408, %v331
      %v410 = vpop.permute.xlu0 %409
      %413 = vset.pattern.permute.xlu0 0
      %414 = vperm.xlu0 %413, %v332
      %v415 = vpop.permute.xlu0 %414
      %418 = vset.pattern.permute.xlu0 0
      %419 = vperm.xlu0 %418, %v333
      %v420 = vpop.permute.xlu0 %419
      %423 = vset.pattern.permute.xlu0 0
      %424 = vperm.xlu0 %423, %v334
      %v425 = vpop.permute.xlu0 %424
      %428 = vset.pattern.permute.xlu0 0
      %429 = vperm.xlu0 %428, %v335
      %v430 = vpop.permute.xlu0 %429
      %v432 = vlaneseq
      %v433 = vshrl.u32 %v432, 7
      %v434 = vsub.s32 0, %v433
      %v435 = vrot.slane %v303, %v434
      %v436 = vmul.f32 %v355, %v435
      %v437 = vmul.f32 %v360, %v435
      %v438 = vmul.f32 %v365, %v435
      %v439 = vmul.f32 %v370, %v435
      %v440 = vmul.f32 %v375, %v435
      %v441 = vmul.f32 %v380, %v435
      %v442 = vmul.f32 %v385, %v435
      %v443 = vmul.f32 %v390, %v435
      %v444 = vmul.f32 %v395, %v435
      %v445 = vmul.f32 %v400, %v435
      %v446 = vmul.f32 %v405, %v435
      %v447 = vmul.f32 %v410, %v435
      %v448 = vmul.f32 %v415, %v435
      %v449 = vmul.f32 %v420, %v435
      %v450 = vmul.f32 %v425, %v435
      %v451 = vmul.f32 %v430, %v435
      %453 = vset.pattern.permute.xlu0 0
      %454 = vperm.xlu0 %453, %v336
      %v455 = vpop.permute.xlu0 %454
      %458 = vset.pattern.permute.xlu0 0
      %459 = vperm.xlu0 %458, %v337
      %v460 = vpop.permute.xlu0 %459
      %463 = vset.pattern.permute.xlu0 0
      %464 = vperm.xlu0 %463, %v338
      %v465 = vpop.permute.xlu0 %464
      %468 = vset.pattern.permute.xlu0 0
      %469 = vperm.xlu0 %468, %v339
      %v470 = vpop.permute.xlu0 %469
      %473 = vset.pattern.permute.xlu0 0
      %474 = vperm.xlu0 %473, %v340
      %v475 = vpop.permute.xlu0 %474
      %478 = vset.pattern.permute.xlu0 0
      %479 = vperm.xlu0 %478, %v341
      %v480 = vpop.permute.xlu0 %479
      %483 = vset.pattern.permute.xlu0 0
      %484 = vperm.xlu0 %483, %v342
      %v485 = vpop.permute.xlu0 %484
      %488 = vset.pattern.permute.xlu0 0
      %489 = vperm.xlu0 %488, %v343
      %v490 = vpop.permute.xlu0 %489
      %493 = vset.pattern.permute.xlu0 0
      %494 = vperm.xlu0 %493, %v344
      %v495 = vpop.permute.xlu0 %494
      %498 = vset.pattern.permute.xlu0 0
      %499 = vperm.xlu0 %498, %v345
      %v500 = vpop.permute.xlu0 %499
      %503 = vset.pattern.permute.xlu0 0
      %504 = vperm.xlu0 %503, %v346
      %v505 = vpop.permute.xlu0 %504
      %508 = vset.pattern.permute.xlu0 0
      %509 = vperm.xlu0 %508, %v347
      %v510 = vpop.permute.xlu0 %509
      %513 = vset.pattern.permute.xlu0 0
      %514 = vperm.xlu0 %513, %v348
      %v515 = vpop.permute.xlu0 %514
      %518 = vset.pattern.permute.xlu0 0
      %519 = vperm.xlu0 %518, %v349
      %v520 = vpop.permute.xlu0 %519
      %523 = vset.pattern.permute.xlu0 0
      %524 = vperm.xlu0 %523, %v350
      %v525 = vpop.permute.xlu0 %524
      %528 = vset.pattern.permute.xlu0 0
      %529 = vperm.xlu0 %528, %v351
      %v530 = vpop.permute.xlu0 %529
      %v532 = vadd.f32 %v455, %v436
      %v533 = vadd.f32 %v460, %v437
      %v534 = vadd.f32 %v465, %v438
      %v535 = vadd.f32 %v470, %v439
      %v536 = vadd.f32 %v475, %v440
      %v537 = vadd.f32 %v480, %v441
      %v538 = vadd.f32 %v485, %v442
      %v539 = vadd.f32 %v490, %v443
      %v540 = vadd.f32 %v495, %v444
      %v541 = vadd.f32 %v500, %v445
      %v542 = vadd.f32 %v505, %v446
      %v543 = vadd.f32 %v510, %v447
      %v544 = vadd.f32 %v515, %v448
      %v545 = vadd.f32 %v520, %v449
      %v546 = vadd.f32 %v525, %v450
      %v547 = vadd.f32 %v530, %v451
      %548 = vset.pattern.permute.xlu0 1
      %549 = vperm.xlu0 %548, %v320
      %v550 = vpop.permute.xlu0 %549
      %552 = vset.pattern.permute.xlu0 1
      %553 = vperm.xlu0 %552, %v321
      %v554 = vpop.permute.xlu0 %553
      %556 = vset.pattern.permute.xlu0 1
      %557 = vperm.xlu0 %556, %v322
      %v558 = vpop.permute.xlu0 %557
      %560 = vset.pattern.permute.xlu0 1
      %561 = vperm.xlu0 %560, %v323
      %v562 = vpop.permute.xlu0 %561
      %564 = vset.pattern.permute.xlu0 1
      %565 = vperm.xlu0 %564, %v324
      %v566 = vpop.permute.xlu0 %565
      %568 = vset.pattern.permute.xlu0 1
      %569 = vperm.xlu0 %568, %v325
      %v570 = vpop.permute.xlu0 %569
      %572 = vset.pattern.permute.xlu0 1
      %573 = vperm.xlu0 %572, %v326
      %v574 = vpop.permute.xlu0 %573
      %576 = vset.pattern.permute.xlu0 1
      %577 = vperm.xlu0 %576, %v327
      %v578 = vpop.permute.xlu0 %577
      %580 = vset.pattern.permute.xlu0 1
      %581 = vperm.xlu0 %580, %v328
      %v582 = vpop.permute.xlu0 %581
      %584 = vset.pattern.permute.xlu0 1
      %585 = vperm.xlu0 %584, %v329
      %v586 = vpop.permute.xlu0 %585
      %588 = vset.pattern.permute.xlu0 1
      %589 = vperm.xlu0 %588, %v330
      %v590 = vpop.permute.xlu0 %589
      %592 = vset.pattern.permute.xlu0 1
      %593 = vperm.xlu0 %592, %v331
      %v594 = vpop.permute.xlu0 %593
      %596 = vset.pattern.permute.xlu0 1
      %597 = vperm.xlu0 %596, %v332
      %v598 = vpop.permute.xlu0 %597
      %600 = vset.pattern.permute.xlu0 1
      %601 = vperm.xlu0 %600, %v333
      %v602 = vpop.permute.xlu0 %601
      %604 = vset.pattern.permute.xlu0 1
      %605 = vperm.xlu0 %604, %v334
      %v606 = vpop.permute.xlu0 %605
      %608 = vset.pattern.permute.xlu0 1
      %609 = vperm.xlu0 %608, %v335
      %v610 = vpop.permute.xlu0 %609
      %v612 = vlaneseq
      %v613 = vshrl.u32 %v612, 7
      %v614 = vsub.s32 1, %v613
      %v615 = vrot.slane %v303, %v614
      %v616 = vmul.f32 %v550, %v615
      %v617 = vmul.f32 %v554, %v615
      %v618 = vmul.f32 %v558, %v615
      %v619 = vmul.f32 %v562, %v615
      %v620 = vmul.f32 %v566, %v615
      %v621 = vmul.f32 %v570, %v615
      %v622 = vmul.f32 %v574, %v615
      %v623 = vmul.f32 %v578, %v615
      %v624 = vmul.f32 %v582, %v615
      %v625 = vmul.f32 %v586, %v615
      %v626 = vmul.f32 %v590, %v615
      %v627 = vmul.f32 %v594, %v615
      %v628 = vmul.f32 %v598, %v615
      %v629 = vmul.f32 %v602, %v615
      %v630 = vmul.f32 %v606, %v615
      %v631 = vmul.f32 %v610, %v615
      %v632 = vadd.f32 %v532, %v616
      %v633 = vadd.f32 %v533, %v617
      %v634 = vadd.f32 %v534, %v618
      %v635 = vadd.f32 %v535, %v619
      %v636 = vadd.f32 %v536, %v620
      %v637 = vadd.f32 %v537, %v621
      %v638 = vadd.f32 %v538, %v622
      %v639 = vadd.f32 %v539, %v623
      %v640 = vadd.f32 %v540, %v624
      %v641 = vadd.f32 %v541, %v625
      %v642 = vadd.f32 %v542, %v626
      %v643 = vadd.f32 %v543, %v627
      %v644 = vadd.f32 %v544, %v628
      %v645 = vadd.f32 %v545, %v629
      %v646 = vadd.f32 %v546, %v630
      %v647 = vadd.f32 %v547, %v631
      %648 = vset.pattern.permute.xlu0 2
      %649 = vperm.xlu0 %648, %v320
      %v650 = vpop.permute.xlu0 %649
      %652 = vset.pattern.permute.xlu0 2
      %653 = vperm.xlu0 %652, %v321
      %v654 = vpop.permute.xlu0 %653
      %656 = vset.pattern.permute.xlu0 2
      %657 = vperm.xlu0 %656, %v322
      %v658 = vpop.permute.xlu0 %657
      %660 = vset.pattern.permute.xlu0 2
      %661 = vperm.xlu0 %660, %v323
      %v662 = vpop.permute.xlu0 %661
      %664 = vset.pattern.permute.xlu0 2
      %665 = vperm.xlu0 %664, %v324
      %v666 = vpop.permute.xlu0 %665
      %668 = vset.pattern.permute.xlu0 2
      %669 = vperm.xlu0 %668, %v325
      %v670 = vpop.permute.xlu0 %669
      %672 = vset.pattern.permute.xlu0 2
      %673 = vperm.xlu0 %672, %v326
      %v674 = vpop.permute.xlu0 %673
      %676 = vset.pattern.permute.xlu0 2
      %677 = vperm.xlu0 %676, %v327
      %v678 = vpop.permute.xlu0 %677
      %680 = vset.pattern.permute.xlu0 2
      %681 = vperm.xlu0 %680, %v328
      %v682 = vpop.permute.xlu0 %681
      %684 = vset.pattern.permute.xlu0 2
      %685 = vperm.xlu0 %684, %v329
      %v686 = vpop.permute.xlu0 %685
      %688 = vset.pattern.permute.xlu0 2
      %689 = vperm.xlu0 %688, %v330
      %v690 = vpop.permute.xlu0 %689
      %692 = vset.pattern.permute.xlu0 2
      %693 = vperm.xlu0 %692, %v331
      %v694 = vpop.permute.xlu0 %693
      %696 = vset.pattern.permute.xlu0 2
      %697 = vperm.xlu0 %696, %v332
      %v698 = vpop.permute.xlu0 %697
      %700 = vset.pattern.permute.xlu0 2
      %701 = vperm.xlu0 %700, %v333
      %v702 = vpop.permute.xlu0 %701
      %704 = vset.pattern.permute.xlu0 2
      %705 = vperm.xlu0 %704, %v334
      %v706 = vpop.permute.xlu0 %705
      %708 = vset.pattern.permute.xlu0 2
      %709 = vperm.xlu0 %708, %v335
      %v710 = vpop.permute.xlu0 %709
      %v712 = vlaneseq
      %v713 = vshrl.u32 %v712, 7
      %v714 = vsub.s32 2, %v713
      %v715 = vrot.slane %v303, %v714
      %v716 = vmul.f32 %v650, %v715
      %v717 = vmul.f32 %v654, %v715
      %v718 = vmul.f32 %v658, %v715
      %v719 = vmul.f32 %v662, %v715
      %v720 = vmul.f32 %v666, %v715
      %v721 = vmul.f32 %v670, %v715
      %v722 = vmul.f32 %v674, %v715
      %v723 = vmul.f32 %v678, %v715
      %v724 = vmul.f32 %v682, %v715
      %v725 = vmul.f32 %v686, %v715
      %v726 = vmul.f32 %v690, %v715
      %v727 = vmul.f32 %v694, %v715
      %v728 = vmul.f32 %v698, %v715
      %v729 = vmul.f32 %v702, %v715
      %v730 = vmul.f32 %v706, %v715
      %v731 = vmul.f32 %v710, %v715
      %v732 = vadd.f32 %v632, %v716
      %v733 = vadd.f32 %v633, %v717
      %v734 = vadd.f32 %v634, %v718
      %v735 = vadd.f32 %v635, %v719
      %v736 = vadd.f32 %v636, %v720
      %v737 = vadd.f32 %v637, %v721
      %v738 = vadd.f32 %v638, %v722
      %v739 = vadd.f32 %v639, %v723
      %v740 = vadd.f32 %v640, %v724
      %v741 = vadd.f32 %v641, %v725
      %v742 = vadd.f32 %v642, %v726
      %v743 = vadd.f32 %v643, %v727
      %v744 = vadd.f32 %v644, %v728
      %v745 = vadd.f32 %v645, %v729
      %v746 = vadd.f32 %v646, %v730
      %v747 = vadd.f32 %v647, %v731
      %v748 = vmax.f32 %v732, 0.0
      %v749 = vmax.f32 %v733, 0.0
      %v750 = vmax.f32 %v734, 0.0
      %v751 = vmax.f32 %v735, 0.0
      %v752 = vmax.f32 %v736, 0.0
      %v753 = vmax.f32 %v737, 0.0
      %v754 = vmax.f32 %v738, 0.0
      %v755 = vmax.f32 %v739, 0.0
      %v756 = vmax.f32 %v740, 0.0
      %v757 = vmax.f32 %v741, 0.0
      %v758 = vmax.f32 %v742, 0.0
      %v759 = vmax.f32 %v743, 0.0
      %v760 = vmax.f32 %v744, 0.0
      %v761 = vmax.f32 %v745, 0.0
      %v762 = vmax.f32 %v746, 0.0
      %v763 = vmax.f32 %v747, 0.0
      %v764 = vpack.c.bf16 %v749, %v748
      %v765 = vpack.c.bf16 %v751, %v750
      %v766 = vpack.c.bf16 %v753, %v752
      %v767 = vpack.c.bf16 %v755, %v754
      %v768 = vpack.c.bf16 %v757, %v756
      %v769 = vpack.c.bf16 %v759, %v758
      %v770 = vpack.c.bf16 %v761, %v760
      %v771 = vpack.c.bf16 %v763, %v762
      %v780 = vunpack.c.l.b16 %v764
      %v781 = vunpack.c.h.b16 %v764
      %v782 = vunpack.c.l.b16 %v765
      %v783 = vunpack.c.h.b16 %v765
      %v784 = vunpack.c.l.b16 %v766
      %v785 = vunpack.c.h.b16 %v766
      %v786 = vunpack.c.l.b16 %v767
      %v787 = vunpack.c.h.b16 %v767
      %v788 = vunpack.c.l.b16 %v768
      %v789 = vunpack.c.h.b16 %v768
      %v790 = vunpack.c.l.b16 %v769
      %v791 = vunpack.c.h.b16 %v769
      %v792 = vunpack.c.l.b16 %v770
      %v793 = vunpack.c.h.b16 %v770
      %v794 = vunpack.c.l.b16 %v771
      %v795 = vunpack.c.h.b16 %v771
      %v796 = vpack.c.b16 %v780, %v780
      %v797 = vpack.c.b16 %v781, %v781
      %v798 = vpack.c.b16 %v782, %v782
      %v799 = vpack.c.b16 %v783, %v783
      %v800 = vpack.c.b16 %v784, %v784
      %v801 = vpack.c.b16 %v785, %v785
      %v802 = vpack.c.b16 %v786, %v786
      %v803 = vpack.c.b16 %v787, %v787
      %v804 = vpack.c.b16 %v788, %v788
      %v805 = vpack.c.b16 %v789, %v789
      %v806 = vpack.c.b16 %v790, %v790
      %v807 = vpack.c.b16 %v791, %v791
      %v808 = vpack.c.b16 %v792, %v792
      %v809 = vpack.c.b16 %v793, %v793
      %v810 = vpack.c.b16 %v794, %v794
      %v811 = vpack.c.b16 %v795, %v795
      %vm828 = vcmask 125952
      %829 = vst.msk [vmem:[%s292] sm:$0xf] %vm828, %v796
      %830 = vst.msk [vmem:[%s292 + $0x4] sm:$0xf] %vm828, %v797
      %831 = vst.msk [vmem:[%s292 + $0x8] sm:$0xf] %vm828, %v798
      %832 = vst.msk [vmem:[%s292 + $0xc] sm:$0xf] %vm828, %v799
      %833 = vst.msk [vmem:[%s292 + $0x10] sm:$0xf] %vm828, %v800
      %834 = vst.msk [vmem:[%s292 + $0x14] sm:$0xf] %vm828, %v801
      %835 = vst.msk [vmem:[%s292 + $0x18] sm:$0xf] %vm828, %v802
      %836 = vst.msk [vmem:[%s292 + $0x1c] sm:$0xf] %vm828, %v803
      %837 = vst.msk [vmem:[%s292 + $0x20] sm:$0xf] %vm828, %v804
      %838 = vst.msk [vmem:[%s292 + $0x24] sm:$0xf] %vm828, %v805
      %839 = vst.msk [vmem:[%s292 + $0x28] sm:$0xf] %vm828, %v806
      %840 = vst.msk [vmem:[%s292 + $0x2c] sm:$0xf] %vm828, %v807
      %841 = vst.msk [vmem:[%s292 + $0x30] sm:$0xf] %vm828, %v808
      %842 = vst.msk [vmem:[%s292 + $0x34] sm:$0xf] %vm828, %v809
      %843 = vst.msk [vmem:[%s292 + $0x38] sm:$0xf] %vm828, %v810
      %844 = vst.msk [vmem:[%s292 + $0x3c] sm:$0xf] %vm828, %v811
      %v845 = vld [vmem:[%s3] sm:$0xf]
      %v846 = vld [vmem:[%s3 + $0x4] sm:$0xf]
      %v847 = vld [vmem:[%s3 + $0x8] sm:$0xf]
      %v848 = vld [vmem:[%s3 + $0xc] sm:$0xf]
      %v849 = vld [vmem:[%s4] sm:$0xff]
      %v850 = vld [vmem:[%s4 + $0x8] sm:$0xff]
      %v851 = vld [vmem:[%s4 + $0x10] sm:$0xff]
      %v852 = vld [vmem:[%s4 + $0x18] sm:$0xff]
      %854 = vset.pattern.permute.xlu0 0
      %855 = vperm.xlu0 %854, %v849
      %v856 = vpop.permute.xlu0 %855
      %859 = vset.pattern.permute.xlu0 0
      %860 = vperm.xlu0 %859, %v850
      %v861 = vpop.permute.xlu0 %860
      %864 = vset.pattern.permute.xlu0 0
      %865 = vperm.xlu0 %864, %v851
      %v866 = vpop.permute.xlu0 %865
      %869 = vset.pattern.permute.xlu0 0
      %870 = vperm.xlu0 %869, %v852
      %v871 = vpop.permute.xlu0 %870
      %v877 = vunpack.c.l.b16 %v845
      %v878 = vunpack.c.l.b16 %v846
      %v879 = vunpack.c.l.b16 %v847
      %v880 = vunpack.c.l.b16 %v848
      %v881 = vpack.c.b16 %v878, %v877
      %v882 = vpack.c.b16 %v880, %v879
      %885 = vmatprep.subr.bf16.mxu0 0
      %886 = vmatpush1.bf16.msra.mxu0 %v771
      %887 = vmatprep.subr.bf16.mxu0 0
      %888 = vmatpush1.bf16.msra.mxu0 %v770
      %889 = vmatprep.subr.bf16.mxu0 0
      %890 = vmatpush1.bf16.msra.mxu0 %v769
      %891 = vmatprep.subr.bf16.mxu0 0
      %892 = vmatpush1.bf16.msra.mxu0 %v768
      %893 = vmatprep.subr.bf16.mxu0 0
      %894 = vmatpush1.bf16.msra.mxu0 %v767
      %895 = vmatprep.subr.bf16.mxu0 0
      %896 = vmatpush1.bf16.msra.mxu0 %v766
      %897 = vmatprep.subr.bf16.mxu0 0
      %898 = vmatpush1.bf16.msra.mxu0 %v765
      %899 = vmatprep.subr.bf16.mxu0 0
      %900 = vmatpush1.bf16.msra.mxu0 %v764
      %901 = vmatprep.subr.bf16.mxu0 0
      %902 = vmatpush2.bf16.msra.mxu0 0
      %903 = vmatprep.subr.bf16.mxu0 0
      %904 = vmatpush2.bf16.msra.mxu0 0
      %905 = vmatprep.subr.bf16.mxu0 0
      %906 = vmatpush2.bf16.msra.mxu0 0
      %907 = vmatprep.subr.bf16.mxu0 0
      %908 = vmatpush2.bf16.msra.mxu0 0
      %909 = vmatprep.subr.bf16.mxu0 0
      %910 = vmatpush2.bf16.msra.mxu0 0
      %911 = vmatprep.subr.bf16.mxu0 0
      %912 = vmatpush2.bf16.msra.mxu0 0
      %913 = vmatprep.subr.bf16.mxu0 0
      %914 = vmatpush2.bf16.msra.mxu0 0
      %915 = vmatprep.subr.bf16.mxu0 0
      %916 = vmatpush2.bf16.msra.mxu0 0
      %917 = vmatprep.mubr.bf16.mxu0 0
      %918 = vmatmul.mubr.bf16.gmra.mxu0 %v881
      %v919 = vpop.f32.mrf.mxu0
      %v920 = vadd.f32 %v856, %v919
      %v921 = vpop.f32.mrf.mxu0
      %v922 = vpop.f32.mrf.mxu0
      %v923 = vadd.f32 %v861, %v922
      %v924 = vpop.f32.mrf.mxu0
      %925 = vmatprep.mubr.bf16.mxu0 0
      %926 = vmatmul.mubr.bf16.gmra.mxu0 %v882
      %v927 = vpop.f32.mrf.mxu0
      %v928 = vadd.f32 %v866, %v927
      %v929 = vpop.f32.mrf.mxu0
      %v930 = vpop.f32.mrf.mxu0
      %v931 = vadd.f32 %v871, %v930
      %v932 = vpop.f32.mrf.mxu0
      %933 = vdwg.mxu0
      %v934 = vpack.c.bf16 %v923, %v920
      %v935 = vpack.c.bf16 %v931, %v928
      %v938 = vunpack.c.l.b16 %v934
      %v939 = vunpack.c.h.b16 %v934
      %v940 = vunpack.c.l.b16 %v935
      %v941 = vunpack.c.h.b16 %v935
      %v942 = vpack.c.b16 %v938, %v938
      %v943 = vpack.c.b16 %v939, %v939
      %v944 = vpack.c.b16 %v940, %v940
      %v945 = vpack.c.b16 %v941, %v941
      %950 = vst.msk [vmem:[%s300] sm:$0xf] %vm828, %v942
      %951 = vst.msk [vmem:[%s300 + $0x4] sm:$0xf] %vm828, %v943
      %952 = vst.msk [vmem:[%s300 + $0x8] sm:$0xf] %vm828, %v944
      %953 = vst.msk [vmem:[%s300 + $0xc] sm:$0xf] %vm828, %v945
      %p954 = scmp.lt.s32.totalorder %s22, 5
      %s955 = scalar_select %p954, %s22, 5
      %p956 = scmp.lt.s32.totalorder %s23, 0
      %s957 = scalar_select %p956, %s23, 0
      %s958 = smul.addr %s955, 16
      %s959 = sadd.s32 %s957, %s958
      %s960 = smul.addr %s959, 4
      %s961 = scalar_lea.vmem %s5, %s960
      %p962 = scmp.lt.s32.totalorder %s22, 5
      %s963 = scalar_select %p962, %s22, 5
      %p964 = scmp.lt.s32.totalorder %s23, 0
      %s965 = scalar_select %p964, %s23, 0
      %s966 = smul.addr %s963, 4
      %s967 = sadd.s32 %s965, %s966
      %s968 = smul.addr %s967, 4
      %s969 = scalar_lea.vmem %s6, %s968
      // Predicated region
      $region41: #{_jit_extract.5} parent=39 // pred_check
        %p970 = pneg %p162
      $region42: #{_jit_extract.5} parent=39 // pred_check_branch
        %972 = sbr.rel (%p970) target = $region44
      $region43: #{_jit_extract.5} parent=39 // pred_region
        _
      $region44: #{_jit_extract.5} parent=39 // pred_fallthru
        _
      // Predicated region
      $region45: #{_jit_extract.5} parent=39 // pred_check
        %p973 = pneg %p190
      $region46: #{_jit_extract.5} parent=39 // pred_check_branch
        %975 = sbr.rel (%p973) target = $region48
      $region47: #{_jit_extract.5} parent=39 // pred_region
        _
      $region48: #{_jit_extract.5} parent=39 // pred_fallthru
        _
    $region40: #{_jit_extract.5} parent=5 // pred_fallthru
      _
    %p976 = scmp.le.s32.totalorder 2, %s13
    // Predicated region
    $region49: #{_jit_extract.5} parent=5 // pred_check
      %p977 = pneg %p976
    $region50: #{_jit_extract.5} parent=5 // pred_check_branch
      %979 = sbr.rel (%p977) target = $region52
    $region51: #{_jit_extract.5} parent=5 // pred_region
      %s980 = ssub.s32 %s13, 2
      // Predicated region
      $region53: #{_jit_extract.5} parent=51 // pred_check
        %p981 = pneg %p168
      $region54: #{_jit_extract.5} parent=51 // pred_check_branch
        %983 = sbr.rel (%p981) target = $region56
      $region55: #{_jit_extract.5} parent=51 // pred_region
        %p984 = scmp.lt.s32.totalorder %s24, 5
        %s985 = scalar_select %p984, %s24, 5
        %p986 = scmp.lt.s32.totalorder %s25, 0
        %s987 = scalar_select %p986, %s25, 0
        %s988 = smul.addr %s985, 16
        %s989 = sadd.s32 %s987, %s988
        %s990 = smul.addr %s989, 4
        %s991 = scalar_lea.vmem %s5, %s990
      $region56: #{_jit_extract.5} parent=51 // pred_fallthru
        _
      // Predicated region
      $region57: #{_jit_extract.5} parent=51 // pred_check
        %p992 = pneg %p196
      $region58: #{_jit_extract.5} parent=51 // pred_check_branch
        %994 = sbr.rel (%p992) target = $region60
      $region59: #{_jit_extract.5} parent=51 // pred_region
        %p995 = scmp.lt.s32.totalorder %s24, 5
        %s996 = scalar_select %p995, %s24, 5
        %p997 = scmp.lt.s32.totalorder %s25, 0
        %s998 = scalar_select %p997, %s25, 0
        %s999 = smul.addr %s996, 4
        %s1000 = sadd.s32 %s998, %s999
        %s1001 = smul.addr %s1000, 4
        %s1002 = scalar_lea.vmem %s6, %s1001
      $region60: #{_jit_extract.5} parent=51 // pred_fallthru
        _
    $region52: #{_jit_extract.5} parent=5 // pred_fallthru
      _
  $region6: #{_jit_extract.5} parent=0 // loop_footer
    %s17 = sadd.s32 1, %s13
  $region7: #{_jit_extract.5} parent=0 // loop_footer_branch
    %12 = sbr.rel target = $region3
  $region8: #{_jit_extract.5} parent=0 // loop_exit
    _

// kernel: _jit_extract.3
$region0: #{_jit_extract.3}
  #allocation0 [shape = 'u32[]', space=smem, size = 0x4, offset = 0x4, fixed_abs, tag = 'smem constant byte address 0x4 - core index']
  #allocation1 [shape = 'u32[144,128]{1,0:T(1,128)}', space=vmem, size = 0x12000, scoped, tag = 'internal scratch']
  %s0 = inlined_call_operand.vmem [shape: bf16[6,3,256], index: 0, kind: input, shape index: {}]
  %s1 = inlined_call_operand.vmem [shape: bf16[32,3], index: 1, kind: input, shape index: {}]
  %s2 = inlined_call_operand.vmem [shape: f32[32,1], index: 2, kind: input, shape index: {}]
  %s3 = inlined_call_operand.vmem [shape: bf16[6,32,256], index: 3, kind: output, shape index: {}]
  %s4 = sld [smem:[#allocation0]]
  $region45: #{_jit_extract.3} parent=0
    _
  %s6 = ssub.s32 1, %s4
  %s7 = scalar_select 0, %s6, %s4
  loop: start=0, step=1, limit=8
  $region2: #{_jit_extract.3} parent=0 // loop_pre_header
    _
  $region3: #{_jit_extract.3} parent=0 // loop_header
    %s9 = sphi 0, %s13
    %p10 = scmp.ge.s32.totalorder %s9, 8
    %s16 = sphi 0, %s28
    %s17 = sphi 0, %s24
    %s18 = sphi 0, %s16
    %s19 = sphi 0, %s17
    %s20 = sphi 0, %s18
    %s21 = sphi 0, %s19
    %s33 = sphi 0, %s35
    %s36 = sphi 0, %s33
    %s37 = sphi 0, %s36
    %s53 = sphi 0, %s37
    %s57 = sphi 0, %s57
    %s59 = sphi 0, %s57
    %s60 = sphi 0, %s59
    %s74 = sphi 0, %s60
    %s78 = sphi 0, %s78
    %s80 = sphi 0, %s78
    %s81 = sphi 0, %s80
    %s95 = sphi 0, %s81
    %s103 = sphi 0, %s105
    %s106 = sphi 0, %s103
    %s107 = sphi 0, %s106
    %s123 = sphi 0, %s107
  $region4: #{_jit_extract.3} parent=0 // loop_header_branch
    %12 = sbr.rel (%p10) target = $region8
  $region5: #{_jit_extract.3} parent=0 // loop_body
    %s14 = ssub.s32 %s9, 1
    %s15 = ssub.s32 %s9, 2
    %s22 = sadd.s32 1, %s17
    %p23 = scmp.ge.s32.totalorder %s22, 1
    %s24 = scalar_select %p23, 0, %s22
    %s25 = sadd.s32 1, %s16
    %s26 = scalar_select %p23, %s25, %s16
    %p27 = scmp.ge.s32.totalorder %s26, 6
    %s28 = scalar_select %p27, 0, %s26
    %s29 = ssub.s32 %s16, %s28
    %s30 = ssub.s32 %s17, %s24
    %s31 = sor.u32 %s29, %s30
    %p32 = scmp.eq.s32.totalorder %s31, 0
    %s34 = sadd.s32 %s33, 1
    %s35 = scalar_select %p32, %s33, %s34
    %p38 = pneg %p32
    %p39 = scmp.eq.s32.totalorder %s9, 5
    %p40 = por %p38, %p39
    %p41 = scmp.ne.s32.totalorder %s33, %s36
    %p42 = scmp.eq.s32.totalorder %s9, 0
    %p43 = por %p41, %p42
    %p44 = scmp.ne.s32.totalorder %s33, %s36
    %p45 = scmp.eq.s32.totalorder %s14, 5
    %p46 = por %p44, %p45
    %p47 = scmp.ne.s32.totalorder %s36, %s37
    %p48 = scmp.eq.s32.totalorder %s14, 0
    %p49 = por %p47, %p48
    %p50 = scmp.ne.s32.totalorder %s36, %s37
    %p51 = scmp.eq.s32.totalorder %s15, 5
    %p52 = por %p50, %p51
    %p54 = scmp.ne.s32.totalorder %s37, %s53
    %p55 = scmp.eq.s32.totalorder %s15, 0
    %p56 = por %p54, %p55
    %s58 = sadd.s32 %s57, 1
    %p61 = scmp.eq.s32.totalorder %s9, 5
    %p62 = scmp.ne.s32.totalorder %s57, %s59
    %p63 = scmp.eq.s32.totalorder %s9, 0
    %p64 = por %p62, %p63
    %p65 = scmp.ne.s32.totalorder %s57, %s59
    %p66 = scmp.eq.s32.totalorder %s14, 5
    %p67 = por %p65, %p66
    %p68 = scmp.ne.s32.totalorder %s59, %s60
    %p69 = scmp.eq.s32.totalorder %s14, 0
    %p70 = por %p68, %p69
    %p71 = scmp.ne.s32.totalorder %s59, %s60
    %p72 = scmp.eq.s32.totalorder %s15, 5
    %p73 = por %p71, %p72
    %p75 = scmp.ne.s32.totalorder %s60, %s74
    %p76 = scmp.eq.s32.totalorder %s15, 0
    %p77 = por %p75, %p76
    %s79 = sadd.s32 %s78, 1
    %p82 = scmp.eq.s32.totalorder %s9, 5
    %p83 = scmp.ne.s32.totalorder %s78, %s80
    %p84 = scmp.eq.s32.totalorder %s9, 0
    %p85 = por %p83, %p84
    %p86 = scmp.ne.s32.totalorder %s78, %s80
    %p87 = scmp.eq.s32.totalorder %s14, 5
    %p88 = por %p86, %p87
    %p89 = scmp.ne.s32.totalorder %s80, %s81
    %p90 = scmp.eq.s32.totalorder %s14, 0
    %p91 = por %p89, %p90
    %p92 = scmp.ne.s32.totalorder %s80, %s81
    %p93 = scmp.eq.s32.totalorder %s15, 5
    %p94 = por %p92, %p93
    %p96 = scmp.ne.s32.totalorder %s81, %s95
    %p97 = scmp.eq.s32.totalorder %s15, 0
    %p98 = por %p96, %p97
    %s99 = ssub.s32 %s16, %s28
    %s100 = ssub.s32 %s17, %s24
    %s101 = sor.u32 %s99, %s100
    %p102 = scmp.eq.s32.totalorder %s101, 0
    %s104 = sadd.s32 %s103, 1
    %s105 = scalar_select %p102, %s103, %s104
    %p108 = pneg %p102
    %p109 = scmp.eq.s32.totalorder %s9, 5
    %p110 = por %p108, %p109
    %p111 = scmp.ne.s32.totalorder %s103, %s106
    %p112 = scmp.eq.s32.totalorder %s9, 0
    %p113 = por %p111, %p112
    %p114 = scmp.ne.s32.totalorder %s103, %s106
    %p115 = scmp.eq.s32.totalorder %s14, 5
    %p116 = por %p114, %p115
    %p117 = scmp.ne.s32.totalorder %s106, %s107
    %p118 = scmp.eq.s32.totalorder %s14, 0
    %p119 = por %p117, %p118
    %p120 = scmp.ne.s32.totalorder %s106, %s107
    %p121 = scmp.eq.s32.totalorder %s15, 5
    %p122 = por %p120, %p121
    %p124 = scmp.ne.s32.totalorder %s107, %s123
    %p125 = scmp.eq.s32.totalorder %s15, 0
    %p126 = por %p124, %p125
    %p127 = scmp.le.s32.totalorder 1, %s9
    %p128 = scmp.lt.s32.totalorder %s9, 7
    %p129 = pnand %p127, %p128
    %p130 = pneg %p129
    // Predicated region
    $region9: #{_jit_extract.3} parent=5 // pred_check
      _
    $region10: #{_jit_extract.3} parent=5 // pred_check_branch
      %132 = sbr.rel (%p129) target = $region12
    $region11: #{_jit_extract.3} parent=5 // pred_region
      %s133 = ssub.s32 %s9, 1
      // Predicated region
      $region13: #{_jit_extract.3} parent=11 // pred_check
        %p134 = pneg %p70
      $region14: #{_jit_extract.3} parent=11 // pred_check_branch
        %136 = sbr.rel (%p134) target = $region16
      $region15: #{_jit_extract.3} parent=11 // pred_region
        _
      $region16: #{_jit_extract.3} parent=11 // pred_fallthru
        _
      // Predicated region
      $region17: #{_jit_extract.3} parent=11 // pred_check
        %p137 = pneg %p91
      $region18: #{_jit_extract.3} parent=11 // pred_check_branch
        %139 = sbr.rel (%p137) target = $region20
      $region19: #{_jit_extract.3} parent=11 // pred_region
        _
      $region20: #{_jit_extract.3} parent=11 // pred_fallthru
        _
    $region12: #{_jit_extract.3} parent=5 // pred_fallthru
      _
    %p140 = scmp.lt.s32.totalorder %s9, 6
    // Predicated region
    $region21: #{_jit_extract.3} parent=5 // pred_check
      %p141 = pneg %p140
    $region22: #{_jit_extract.3} parent=5 // pred_check_branch
      %143 = sbr.rel (%p141) target = $region24
    $region23: #{_jit_extract.3} parent=5 // pred_region
      // Predicated region
      $region25: #{_jit_extract.3} parent=23 // pred_check
        %p144 = pneg %p43
      $region26: #{_jit_extract.3} parent=23 // pred_check_branch
        %146 = sbr.rel (%p144) target = $region28
      $region27: #{_jit_extract.3} parent=23 // pred_region
        %s147 = smul.u32 2, %s17
        %p148 = scmp.lt.s32.totalorder %s16, 5
        %s149 = scalar_select %p148, %s16, 5
        %p150 = scmp.lt.s32.totalorder %s147, 1
        %s151 = scalar_select %p150, %s147, 1
        %s152 = smul.addr %s149, 2
        %s153 = sadd.s32 %s151, %s152
        %s154 = smul.addr %s153, 2
        %s155 = scalar_lea.vmem %s0, %s154
        %s156 = smul.u32 2, %s17
      $region28: #{_jit_extract.3} parent=23 // pred_fallthru
        _
    $region24: #{_jit_extract.3} parent=5 // pred_fallthru
      _
    %p157 = scmp.le.s32.totalorder 1, %s9
    %p158 = scmp.lt.s32.totalorder %s9, 7
    %p159 = pnand %p157, %p158
    %p160 = pneg %p159
    // Predicated region
    $region29: #{_jit_extract.3} parent=5 // pred_check
      _
    $region30: #{_jit_extract.3} parent=5 // pred_check_branch
      %162 = sbr.rel (%p159) target = $region32
    $region31: #{_jit_extract.3} parent=5 // pred_region
      %s163 = ssub.s32 %s9, 1
      %s164 = smul.u32 2, %s19
      %p165 = scmp.lt.s32.totalorder %s18, 5
      %s166 = scalar_select %p165, %s18, 5
      %p167 = scmp.lt.s32.totalorder %s164, 1
      %s168 = scalar_select %p167, %s164, 1
      %s169 = smul.addr %s166, 2
      %s170 = sadd.s32 %s168, %s169
      %s171 = smul.addr %s170, 2
      %s172 = scalar_lea.vmem %s0, %s171
      %p173 = pneg %p49
      %p174 = pneg %p46
      %p175 = pneg %p70
      %p176 = pneg %p67
      %p177 = pneg %p91
      %p178 = pneg %p88
      %p179 = pneg %p119
      %p180 = pneg %p116
      %s181 = smul.u32 2, %s19
      %p182 = scmp.lt.s32.totalorder %s18, 5
      %s183 = scalar_select %p182, %s18, 5
      %p184 = scmp.lt.s32.totalorder %s181, 1
      %s185 = scalar_select %p184, %s181, 1
      %s186 = smul.addr %s183, 8
      %s187 = sadd.s32 %s185, %s186
      %s188 = smul.addr %s187, 4
      %s189 = scalar_lea.vmem %s3, %s188
      %s190 = smul.u32 2, %s19
      %p191 = scmp.lt.s32.totalorder %s18, 5
      %s192 = scalar_select %p191, %s18, 5
      %p193 = scmp.lt.s32.totalorder %s190, 1
      %s194 = scalar_select %p193, %s190, 1
      %s195 = smul.addr %s192, 2
      %s196 = sadd.s32 %s194, %s195
      %s197 = smul.addr %s196, 2
      %s198 = scalar_lea.vmem %s0, %s197
      %s199 = smul.u32 2, %s19
      %s200 = smul.u32 2, %s19
      %p201 = scmp.lt.s32.totalorder %s18, 5
      %s202 = scalar_select %p201, %s18, 5
      %p203 = scmp.lt.s32.totalorder %s200, 1
      %s204 = scalar_select %p203, %s200, 1
      %s205 = smul.addr %s202, 8
      %s206 = sadd.s32 %s204, %s205
      %s207 = smul.addr %s206, 4
      %s208 = scalar_lea.vmem %s3, %s207
      %s209 = smul.u32 2, %s19
      %v210 = vld [vmem:[%s198] sm:$0xf]
      %v211 = vunpack.c.l.bf16 %v210
      %v212 = vld [vmem:[%s1] sm:$0xf]
      %v213 = vld [vmem:[%s1 + $0x4] sm:$0xf]
      %v214 = vld [vmem:[%s1 + $0x8] sm:$0xf]
      %v215 = vld [vmem:[%s1 + $0xc] sm:$0xf]
      %v216 = vunpack.c.l.bf16 %v212
      %v217 = vunpack.c.l.bf16 %v213
      %v218 = vunpack.c.l.bf16 %v214
      %v219 = vunpack.c.l.bf16 %v215
      %v220 = vld [vmem:[%s2] sm:$0xff]
      %v221 = vld [vmem:[%s2 + $0x8] sm:$0xff]
      %v222 = vld [vmem:[%s2 + $0x10] sm:$0xff]
      %v223 = vld [vmem:[%s2 + $0x18] sm:$0xff]
      %225 = vset.pattern.permute.xlu0 0
      %226 = vperm.xlu0 %225, %v216
      %v227 = vpop.permute.xlu0 %226
      %230 = vset.pattern.permute.xlu0 0
      %231 = vperm.xlu0 %230, %v217
      %v232 = vpop.permute.xlu0 %231
      %235 = vset.pattern.permute.xlu0 0
      %236 = vperm.xlu0 %235, %v218
      %v237 = vpop.permute.xlu0 %236
      %240 = vset.pattern.permute.xlu0 0
      %241 = vperm.xlu0 %240, %v219
      %v242 = vpop.permute.xlu0 %241
      %v245 = vlaneseq
      %v246 = vshrl.u32 %v245, 7
      %v247 = vsub.s32 0, %v246
      %v248 = vrot.slane %v211, %v247
      %v249 = vlaneseq
      %v250 = vshrl.u32 %v249, 7
      %v251 = vsub.s32 4, %v250
      %v252 = vrot.slane %v211, %v251
      %v255 = vlaneseq
      %v256 = vshrl.u32 %v255, 7
      %v257 = vsub.s32 0, %v256
      %v258 = vrot.slane %v248, %v257
      %v259 = vlaneseq
      %v260 = vshrl.u32 %v259, 7
      %v261 = vsub.s32 0, %v260
      %v262 = vrot.slane %v252, %v261
      %v263 = vmul.f32 %v227, %v258
      %v264 = vmul.f32 %v227, %v262
      %v265 = vmul.f32 %v232, %v258
      %v266 = vmul.f32 %v232, %v262
      %v267 = vmul.f32 %v237, %v258
      %v268 = vmul.f32 %v237, %v262
      %v269 = vmul.f32 %v242, %v258
      %v270 = vmul.f32 %v242, %v262
      %272 = vset.pattern.permute.xlu0 0
      %273 = vperm.xlu0 %272, %v220
      %v274 = vpop.permute.xlu0 %273
      %277 = vset.pattern.permute.xlu0 0
      %278 = vperm.xlu0 %277, %v221
      %v279 = vpop.permute.xlu0 %278
      %282 = vset.pattern.permute.xlu0 0
      %283 = vperm.xlu0 %282, %v222
      %v284 = vpop.permute.xlu0 %283
      %287 = vset.pattern.permute.xlu0 0
      %288 = vperm.xlu0 %287, %v223
      %v289 = vpop.permute.xlu0 %288
      %v291 = vadd.f32 %v274, %v263
      %v292 = vadd.f32 %v274, %v264
      %v293 = vadd.f32 %v279, %v265
      %v294 = vadd.f32 %v279, %v266
      %v295 = vadd.f32 %v284, %v267
      %v296 = vadd.f32 %v284, %v268
      %v297 = vadd.f32 %v289, %v269
      %v298 = vadd.f32 %v289, %v270
      %299 = vset.pattern.permute.xlu0 1
      %300 = vperm.xlu0 %299, %v216
      %v301 = vpop.permute.xlu0 %300
      %303 = vset.pattern.permute.xlu0 1
      %304 = vperm.xlu0 %303, %v217
      %v305 = vpop.permute.xlu0 %304
      %307 = vset.pattern.permute.xlu0 1
      %308 = vperm.xlu0 %307, %v218
      %v309 = vpop.permute.xlu0 %308
      %311 = vset.pattern.permute.xlu0 1
      %312 = vperm.xlu0 %311, %v219
      %v313 = vpop.permute.xlu0 %312
      %v315 = vlaneseq
      %v316 = vshrl.u32 %v315, 7
      %v317 = vsub.s32 1, %v316
      %v318 = vrot.slane %v211, %v317
      %v319 = vlaneseq
      %v320 = vshrl.u32 %v319, 7
      %v321 = vsub.s32 5, %v320
      %v322 = vrot.slane %v211, %v321
      %v325 = vlaneseq
      %v326 = vshrl.u32 %v325, 7
      %v327 = vsub.s32 1, %v326
      %v328 = vrot.slane %v318, %v327
      %v329 = vlaneseq
      %v330 = vshrl.u32 %v329, 7
      %v331 = vsub.s32 1, %v330
      %v332 = vrot.slane %v322, %v331
      %v333 = vmul.f32 %v301, %v328
      %v334 = vmul.f32 %v301, %v332
      %v335 = vmul.f32 %v305, %v328
      %v336 = vmul.f32 %v305, %v332
      %v337 = vmul.f32 %v309, %v328
      %v338 = vmul.f32 %v309, %v332
      %v339 = vmul.f32 %v313, %v328
      %v340 = vmul.f32 %v313, %v332
      %v341 = vadd.f32 %v291, %v333
      %v342 = vadd.f32 %v292, %v334
      %v343 = vadd.f32 %v293, %v335
      %v344 = vadd.f32 %v294, %v336
      %v345 = vadd.f32 %v295, %v337
      %v346 = vadd.f32 %v296, %v338
      %v347 = vadd.f32 %v297, %v339
      %v348 = vadd.f32 %v298, %v340
      %349 = vset.pattern.permute.xlu0 2
      %350 = vperm.xlu0 %349, %v216
      %v351 = vpop.permute.xlu0 %350
      %353 = vset.pattern.permute.xlu0 2
      %354 = vperm.xlu0 %353, %v217
      %v355 = vpop.permute.xlu0 %354
      %357 = vset.pattern.permute.xlu0 2
      %358 = vperm.xlu0 %357, %v218
      %v359 = vpop.permute.xlu0 %358
      %361 = vset.pattern.permute.xlu0 2
      %362 = vperm.xlu0 %361, %v219
      %v363 = vpop.permute.xlu0 %362
      %v365 = vlaneseq
      %v366 = vshrl.u32 %v365, 7
      %v367 = vsub.s32 2, %v366
      %v368 = vrot.slane %v211, %v367
      %v369 = vlaneseq
      %v370 = vshrl.u32 %v369, 7
      %v371 = vsub.s32 6, %v370
      %v372 = vrot.slane %v211, %v371
      %v375 = vlaneseq
      %v376 = vshrl.u32 %v375, 7
      %v377 = vsub.s32 2, %v376
      %v378 = vrot.slane %v368, %v377
      %v379 = vlaneseq
      %v380 = vshrl.u32 %v379, 7
      %v381 = vsub.s32 2, %v380
      %v382 = vrot.slane %v372, %v381
      %v383 = vmul.f32 %v351, %v378
      %v384 = vmul.f32 %v351, %v382
      %v385 = vmul.f32 %v355, %v378
      %v386 = vmul.f32 %v355, %v382
      %v387 = vmul.f32 %v359, %v378
      %v388 = vmul.f32 %v359, %v382
      %v389 = vmul.f32 %v363, %v378
      %v390 = vmul.f32 %v363, %v382
      %v391 = vadd.f32 %v341, %v383
      %v392 = vadd.f32 %v342, %v384
      %v393 = vadd.f32 %v343, %v385
      %v394 = vadd.f32 %v344, %v386
      %v395 = vadd.f32 %v345, %v387
      %v396 = vadd.f32 %v346, %v388
      %v397 = vadd.f32 %v347, %v389
      %v398 = vadd.f32 %v348, %v390
      %v399 = vmax.f32 %v391, 0.0
      %v400 = vmax.f32 %v392, 0.0
      %v401 = vmax.f32 %v393, 0.0
      %v402 = vmax.f32 %v394, 0.0
      %v403 = vmax.f32 %v395, 0.0
      %v404 = vmax.f32 %v396, 0.0
      %v405 = vmax.f32 %v397, 0.0
      %v406 = vmax.f32 %v398, 0.0
      %v407 = vpack.c.bf16 %v401, %v399
      %v408 = vpack.c.bf16 %v402, %v400
      %v409 = vpack.c.bf16 %v405, %v403
      %v410 = vpack.c.bf16 %v406, %v404
      %v415 = vunpack.c.l.b16 %v407
      %v416 = vunpack.c.l.b16 %v408
      %v417 = vunpack.c.h.b16 %v407
      %v418 = vunpack.c.h.b16 %v408
      %v419 = vunpack.c.l.b16 %v409
      %v420 = vunpack.c.l.b16 %v410
      %v421 = vunpack.c.h.b16 %v409
      %v422 = vunpack.c.h.b16 %v410
      %v423 = vpack.c.b16 %v416, %v415
      %v424 = vpack.c.b16 %v418, %v417
      %v425 = vpack.c.b16 %v420, %v419
      %v426 = vpack.c.b16 %v422, %v421
      %431 = vst [vmem:[%s208] sm:$0xff] %v423
      %432 = vst [vmem:[%s208 + $0x8] sm:$0xff] %v424
      %433 = vst [vmem:[%s208 + $0x10] sm:$0xff] %v425
      %434 = vst [vmem:[%s208 + $0x18] sm:$0xff] %v426
      %s435 = smul.u32 2, %s19
      %p436 = scmp.lt.s32.totalorder %s18, 5
      %s437 = scalar_select %p436, %s18, 5
      %p438 = scmp.lt.s32.totalorder %s435, 1
      %s439 = scalar_select %p438, %s435, 1
      %s440 = smul.addr %s437, 8
      %s441 = sadd.s32 %s439, %s440
      %s442 = smul.addr %s441, 4
      %s443 = scalar_lea.vmem %s3, %s442
      // Predicated region
      $region33: #{_jit_extract.3} parent=31 // pred_check
        %p444 = pneg %p116
      $region34: #{_jit_extract.3} parent=31 // pred_check_branch
        %446 = sbr.rel (%p444) target = $region36
      $region35: #{_jit_extract.3} parent=31 // pred_region
        %s447 = smul.u32 2, %s19
      $region36: #{_jit_extract.3} parent=31 // pred_fallthru
        _
    $region32: #{_jit_extract.3} parent=5 // pred_fallthru
      _
    %p448 = scmp.le.s32.totalorder 2, %s9
    // Predicated region
    $region37: #{_jit_extract.3} parent=5 // pred_check
      %p449 = pneg %p448
    $region38: #{_jit_extract.3} parent=5 // pred_check_branch
      %451 = sbr.rel (%p449) target = $region40
    $region39: #{_jit_extract.3} parent=5 // pred_region
      %s452 = ssub.s32 %s9, 2
      // Predicated region
      $region41: #{_jit_extract.3} parent=39 // pred_check
        %p453 = pneg %p122
      $region42: #{_jit_extract.3} parent=39 // pred_check_branch
        %455 = sbr.rel (%p453) target = $region44
      $region43: #{_jit_extract.3} parent=39 // pred_region
        %s456 = smul.u32 2, %s21
        %p457 = scmp.lt.s32.totalorder %s20, 5
        %s458 = scalar_select %p457, %s20, 5
        %p459 = scmp.lt.s32.totalorder %s456, 1
        %s460 = scalar_select %p459, %s456, 1
        %s461 = smul.addr %s458, 8
        %s462 = sadd.s32 %s460, %s461
        %s463 = smul.addr %s462, 4
        %s464 = scalar_lea.vmem %s3, %s463
      $region44: #{_jit_extract.3} parent=39 // pred_fallthru
        _
    $region40: #{_jit_extract.3} parent=5 // pred_fallthru
      _
  $region6: #{_jit_extract.3} parent=0 // loop_footer
    %s13 = sadd.s32 1, %s9
  $region7: #{_jit_extract.3} parent=0 // loop_footer_branch
    %8 = sbr.rel target = $region3
  $region8: #{_jit_extract.3} parent=0 // loop_exit
    _

</llo_original>
